<compile_context>
chip_gen: v7x
topology: tpu7x:2x2x1
jax: 0.10.0
libtpu: 0.0.40
codegen_flags: <defaults>
</compile_context>

<pallas_src>
import functools

import jax
import jax.numpy as jnp
from jax.experimental import pallas as pl
from jax.experimental.pallas import tpu as pltpu


# ----------------------------------------------------------------------------
# Fused depthwise 3x3 conv (padding=1, groups=dim) + non-overlapping AvgPool
# ----------------------------------------------------------------------------
def _token_init_kernel(x_ref, p_ref, out_ref, wpad_ref, *,
                       H, W, C, k, Hg, Wg, nchw_input):
    """One grid step processes Bblk batch elements.

    x_ref   : (Bblk, C, H*W) if nchw_input else (Bblk, H, W, C)   native dtype
    p_ref   : (10, C) f32   rows 0-2: conv kernel row 0 (top,   pairs with dh=-1)
                            rows 3-5: conv kernel row 2 (bottom, pairs with dh=+1)
                            rows 6-8: per-column sums of the 3x3 kernel
                            row  9  : conv bias
    out_ref : (Bblk, Hg*Wg, C)  pooled conv output, carrier-token row order
    wpad_ref: (Hg, W+16, C) f32 zero-halo scratch for the +/-1 column shifts
    """
    del H  # only k, Hg, Wg and W are needed directly
    Bblk = x_ref.shape[0]
    inv = 1.0 / float(k * k)

    # Zero the halo columns once per grid step (interior stores never touch
    # them; scratch state must not be assumed to persist across the "parallel"
    # batch axis).  Both halo stores are 8-sublane aligned.
    zero8 = jnp.zeros((Hg, 8, C), jnp.float32)
    wpad_ref[:, 0:8, :] = zero8
    wpad_ref[:, W + 8:W + 16, :] = zero8

    wtop = [p_ref[j, :] for j in range(3)]        # (C,) each, kernel row 0
    wbot = [p_ref[3 + j, :] for j in range(3)]    # kernel row 2
    wsum = [p_ref[6 + j, :] for j in range(3)]    # column sums
    bias = p_ref[9, :]

    def wconv3(field, coef):
        # 3-tap cross-correlation along W with zero padding:
        #   out[m] = coef[0]*field[m-1] + coef[1]*field[m] + coef[2]*field[m+1]
        # Implemented with a zero-halo scratch: aligned interior store, two
        # small shifted loads (data is already 1/k of full resolution here).
        wpad_ref[:, 8:W + 8, :] = field
        return (coef[0] * wpad_ref[:, 7:W + 7, :]
                + coef[1] * field
                + coef[2] * wpad_ref[:, 9:W + 9, :])

    def blocksum_w(f):                            # (Hg, W, C) -> (Hg, Wg, C)
        return f.reshape(Hg, Wg, k, C).sum(axis=2)

    for b in range(Bblk):                         # static unroll, Bblk <= 8
        if nchw_input:
            xc = x_ref[b].astype(jnp.float32)     # (C, H*W)
            # TODO(synk): keep bf16 inputs in bf16 through this transpose once
            # validated; f32 is used for maximal lowering safety.
            xb = xc.T.reshape(Hg, k, W, C)        # XLU 2-D transpose + aligned split
        else:
            xb = x_ref[b].astype(jnp.float32).reshape(Hg, k, W, C)

        a0 = xb.sum(axis=1)                       # (Hg, W, C) un-shifted k-row sums
        first = xb[:, 0]                          # row i*k       of each H-block
        last = xb[:, k - 1]                       # row i*k + k-1 of each H-block

        # pool(conv(x)) via linearity:
        #   out[i] = (1/k^2) * (P0[i] - U[i] - V[i] + U[i+1] + V[i-1]) + bias
        p0 = blocksum_w(wconv3(a0, wsum))         # (Hg, Wg, C)
        u = blocksum_w(wconv3(first, wbot))       # "row below" terms (dh=+1)
        v = blocksum_w(wconv3(last, wtop))        # "row above" terms (dh=-1)

        for i in range(Hg):
            row = p0[i] - u[i] - v[i]
            if i + 1 < Hg:
                row = row + u[i + 1]
            if i > 0:
                row = row + v[i - 1]
            out_ref[b, i * Wg:(i + 1) * Wg, :] = (
                row * inv + bias).astype(out_ref.dtype)


# ----------------------------------------------------------------------------
# Generation-aware wrapper helpers
# ----------------------------------------------------------------------------
def _tpu_params():
    """(vmem_capacity_bytes, tensorcores_per_chip) with safe fallbacks."""
    vmem_cap = 128 * 1024 * 1024
    num_tc = 1
    try:
        info = pltpu.get_tpu_info()
        cap = getattr(info, "vmem_capacity_bytes", None)
        if cap:
            vmem_cap = int(cap)
    except Exception:
        pass
    try:
        num_tc = int(getattr(jax.devices()[0], "num_cores", 1) or 1)
    except Exception:
        pass
    if vmem_cap <= 80 * 1024 * 1024:      # v7x-class part: 64 MiB VMEM, 2 TCs/chip
        num_tc = max(num_tc, 2)
    return vmem_cap, num_tc


def _pick_batch_block(B, H, W, C, in_itemsize, vmem_cap, num_tc):
    """Batch elements per grid step.

    Big enough to amortize the ~0.35us/step grid overhead with large DMAs,
    small enough to stay inside VMEM; only on 2-TC (v7x-class) parts is the
    block additionally capped so >=2 grid steps exist to feed both cores.
    A non-divisor B falls back to a smaller divisor (perf cliff, never wrong).
    """
    f32 = 4
    per_b = (2 * C * H * W * in_itemsize          # double-buffered input block
             + 3 * C * H * W * f32)               # in-kernel f32 working set
    budget = max(8 * 1024 * 1024, int(vmem_cap * 0.45))
    cap = max(1, min(B, budget // max(per_b, 1), 8))
    if num_tc >= 2 and B >= 2:
        cap = min(cap, max(1, B // 2))
    return max(d for d in range(1, cap + 1) if B % d == 0)


def token_initializer_pallas(x_nchw, conv_w, conv_b, *, input_resolution,
                             window_size, ct_size=1):
    """TokenInitializer.forward: depthwise conv -> avgpool -> carrier tokens."""
    B, C, H, W = x_nchw.shape
    output_size = int(ct_size * input_resolution / window_size)
    stride = int(input_resolution / output_size)
    k = input_resolution - (output_size - 1) * stride
    assert k == stride, "non-overlapping pooling assumed"
    Hg = (H - k) // stride + 1
    Wg = (W - k) // stride + 1
    # Like the PyTorch module, semantics assume H == W == input_resolution.
    assert Hg * k == H and Wg * k == W, "spatial dims must tile by the pool size"
    assert Hg % ct_size == 0 and Wg % ct_size == 0

    # Packed per-channel coefficients: conv rows 0 and 2, column sums, bias.
    wt = jnp.transpose(conv_w[:, 0, :, :], (1, 2, 0)).astype(jnp.float32)   # (3,3,C)
    params = jnp.concatenate(
        [wt[0], wt[2], wt.sum(axis=0), conv_b.reshape(1, C).astype(jnp.float32)],
        axis=0)                                                             # (10, C)

    vmem_cap, num_tc = _tpu_params()
    Bblk = _pick_batch_block(B, H, W, C, jnp.dtype(x_nchw.dtype).itemsize,
                             vmem_cap, num_tc)
    vmem_limit = int(min(vmem_cap, 128 * 1024 * 1024) * 3 // 4)

    def run(x_arr, nchw):
        kernel = functools.partial(_token_init_kernel, H=H, W=W, C=C, k=k,
                                   Hg=Hg, Wg=Wg, nchw_input=nchw)
        in0 = (pl.BlockSpec((Bblk, C, H * W), lambda i: (i, 0, 0)) if nchw
               else pl.BlockSpec((Bblk, H, W, C), lambda i: (i, 0, 0, 0)))
        # TODO(synk): for very large input_resolution on v7x add an H-band grid
        # axis (k-aligned bands); add pipeline_mode=pl.Buffered(3) once DMA-bound.
        return pl.pallas_call(
            kernel,
            out_shape=jax.ShapeDtypeStruct((B, Hg * Wg, C), x_nchw.dtype),
            grid=(B // Bblk,),
            in_specs=[in0, pl.BlockSpec((10, C), lambda i: (0, 0))],
            out_specs=pl.BlockSpec((Bblk, Hg * Wg, C), lambda i: (i, 0, 0)),
            scratch_shapes=[pltpu.VMEM((Hg, W + 16, C), jnp.float32)],
            compiler_params=pltpu.CompilerParams(
                dimension_semantics=("parallel",),
                vmem_limit_bytes=vmem_limit),
        )(x_arr, params)

    try:
        # Main path: ingest NCHW directly ((B, C, H*W) is a free metadata
        # reshape) -- no wrapper-side HBM transpose pass.
        pooled = run(x_nchw.reshape(B, C, H * W), nchw=True)
    except Exception:
        # Lowering safety net: materialize NHWC in the wrapper (one extra HBM
        # pass) and skip the in-kernel XLU transpose.
        pooled = run(jnp.transpose(x_nchw, (0, 2, 3, 1)), nchw=False)

    if ct_size == 1:
        return pooled                       # already (B, Hg*Wg, C) carrier order
    cs = ct_size
    ct = pooled.reshape(B, Hg // cs, cs, Wg // cs, cs, C)
    ct = jnp.transpose(ct, (0, 1, 3, 2, 4, 5)).reshape(-1, Hg * Wg, C)
    return ct


# ----------------------------------------------------------------------------
# Pure-layout helpers (data movement only -> plain JAX glue)
# ----------------------------------------------------------------------------
def window_partition(x, window_size):
    B, C, H, W = x.shape
    x = x.reshape(B, C, H // window_size, window_size, W // window_size, window_size)
    windows = jnp.transpose(x, (0, 2, 4, 3, 5, 1)).reshape(-1, window_size * window_size, C)
    return windows


def window_reverse(windows, window_size, H, W, B):
    x = windows.reshape(B, H // window_size, W // window_size, window_size, window_size, -1)
    x = jnp.transpose(x, (0, 5, 1, 3, 2, 4)).reshape(B, windows.shape[2], H, W)
    return x


# ----------------------------------------------------------------------------
# Module
# ----------------------------------------------------------------------------
class LightweightFusionTransformerEncoderPallas:
    def __init__(self, point_pred_layers, num_layers, *, dim, input_resolution,
                 window_size, ct_size=1, only_local=False, hierarchy=True,
                 norm=None, key=None):
        self.transformer_block = True
        self.window_size = window_size
        self.point_pred_layers = point_pred_layers
        self.num_layers = num_layers
        self.norm = norm
        self.input_resolution = input_resolution
        self.ct_size = ct_size
        self.do_gt = (not only_local) and (input_resolution // window_size > 1) and hierarchy
        if self.do_gt:
            kw, kb = jax.random.split(key)
            # deterministic init of the depthwise conv params
            # (shapes as in nn.Conv2d(dim, dim, 3, padding=1, groups=dim))
            bound = 1.0 / 3.0
            self.conv_w = jax.random.uniform(kw, (dim, 1, 3, 3), jnp.float32, -bound, bound)
            self.conv_b = jax.random.uniform(kb, (dim,), jnp.float32, -bound, bound)

    def __call__(self, src, mask=None, src_key_padding_mask=None, pos=None,
                 height=32, width=32):
        weights = []
        ct = (token_initializer_pallas(
                  src, self.conv_w, self.conv_b,
                  input_resolution=self.input_resolution,
                  window_size=self.window_size, ct_size=self.ct_size)
              if self.do_gt else None)
        B, C, H, W = src.shape
        if self.transformer_block:
            output = window_partition(src, self.window_size)
        for layer_i in range(self.num_layers):
            # TODO(synk): `encoder_layer` is an external module injected via the
            # constructor (not defined in the source file); layers are pass-through.
            output, ct = output, ct
        if self.transformer_block:
            output = window_reverse(output, self.window_size, H, W, B)
        if self.norm is not None:
            output = self.norm(output)
        return output, weights


# ----------------------------------------------------------------------------
# Pure-JAX reference for the TokenInitializer hot path (correctness check)
# ----------------------------------------------------------------------------
def _token_initializer_ref(x_nchw, w, b, input_resolution, window_size, ct_size):
    C = x_nchw.shape[1]
    y = jax.lax.conv_general_dilated(
        x_nchw, w, window_strides=(1, 1), padding=((1, 1), (1, 1)),
        feature_group_count=C, dimension_numbers=("NCHW", "OIHW", "NCHW"))
    y = y + b.reshape(1, C, 1, 1)
    output_size = int(ct_size * input_resolution / window_size)
    stride = int(input_resolution / output_size)
    k = input_resolution - (output_size - 1) * stride
    y = jax.lax.reduce_window(y, 0.0, jax.lax.add,
                              (1, 1, k, k), (1, 1, stride, stride), "VALID") / (k * k)
    B, Cc, Hg, Wg = y.shape
    cs = ct_size
    ct = y.reshape(B, Cc, Hg // cs, cs, Wg // cs, cs)
    ct = jnp.transpose(ct, (0, 2, 4, 3, 5, 1)).reshape(-1, Hg * Wg, Cc)
    return ct


if __name__ == "__main__":
    key = jax.random.PRNGKey(0)
    kx, kp = jax.random.split(key)

    B, C, H, W = 2, 8, 16, 16
    window_size = 8
    src = jax.random.normal(kx, (B, C, H, W), jnp.float32)

    enc = LightweightFusionTransformerEncoderPallas(
        point_pred_layers=0, num_layers=2,
        dim=C, input_resolution=H, window_size=window_size, ct_size=1, key=kp)

    out, weights = enc(src, height=H, width=W)
    out = jax.block_until_ready(out)
    assert out.shape == (B, C, H, W)
    # layers are identity pass-through -> partition+reverse must round-trip
    assert jnp.allclose(out, src, atol=1e-5), "window round-trip mismatch"

    # check the Pallas carrier-token kernel against a pure-JAX reference
    ct_pallas = jax.block_until_ready(token_initializer_pallas(
        src, enc.conv_w, enc.conv_b, input_resolution=H,
        window_size=window_size, ct_size=1))
    ct_ref = _token_initializer_ref(src, enc.conv_w, enc.conv_b, H, window_size, 1)
    assert ct_pallas.shape == ct_ref.shape
    assert jnp.allclose(ct_pallas, ct_ref, atol=1e-4, rtol=1e-4), \
        "TokenInitializer kernel mismatch"

    print("KERNEL_OK")
</pallas_src>

<mosaic_0001>
module attributes {stable_mosaic.version = 11 : i64} {
  func.func @_token_init_kernel(%arg0: i32, %arg1: memref<2x8x256xf32, #tpu.memory_space<vmem>>, %arg2: memref<10x8xf32, #tpu.memory_space<vmem>>, %arg3: memref<2x4x8xf32, #tpu.memory_space<vmem>>, %arg4: memref<2x32x8xf32, #tpu.memory_space<vmem>>) attributes {dimension_semantics = [#tpu.dimension_semantics<parallel>], iteration_bounds = array<i64: 1>, scalar_prefetch = 0 : i64, scratch_operands = 1 : i64, tpu.core_type = #tpu.core_type<tc>, window_params = [{transform_indices = @transform_0, window_bounds = array<i64: 2, 8, 256>}, {pipeline_mode = #tpu.pipeline_mode<synchronous>, transform_indices = @transform_1, window_bounds = array<i64: 10, 8>}, {transform_indices = @transform_2, window_bounds = array<i64: 2, 4, 8>}]} {
    %cst = arith.constant 0.000000e+00 : f32
    %0 = vector.broadcast %cst : f32 to vector<2x8x8xf32>
    %c0 = arith.constant 0 : index
    %c0_0 = arith.constant 0 : index
    %c0_1 = arith.constant 0 : index
    %1 = vector.load %arg4[%c0, %c0_0, %c0_1] : memref<2x32x8xf32, #tpu.memory_space<vmem>>, vector<2x8x8xf32>
    tpu.vector_store %arg4[%c0, %c0_0, %c0_1], %0 {strides = array<i32>} : memref<2x32x8xf32, #tpu.memory_space<vmem>>, vector<2x8x8xf32>,
    %c0_2 = arith.constant 0 : index
    %c24 = arith.constant 24 : index
    %c0_3 = arith.constant 0 : index
    %2 = vector.load %arg4[%c0_2, %c24, %c0_3] : memref<2x32x8xf32, #tpu.memory_space<vmem>>, vector<2x8x8xf32>
    tpu.vector_store %arg4[%c0_2, %c24, %c0_3], %0 {strides = array<i32>} : memref<2x32x8xf32, #tpu.memory_space<vmem>>, vector<2x8x8xf32>,
    %c0_4 = arith.constant 0 : index
    %c0_5 = arith.constant 0 : index
    %3 = vector.load %arg2[%c0_4, %c0_5] : memref<10x8xf32, #tpu.memory_space<vmem>>, vector<1x8xf32>
    %4 = vector.shape_cast %3 : vector<1x8xf32> to vector<8xf32>
    %c1 = arith.constant 1 : index
    %c0_6 = arith.constant 0 : index
    %5 = vector.load %arg2[%c1, %c0_6] : memref<10x8xf32, #tpu.memory_space<vmem>>, vector<1x8xf32>
    %6 = vector.shape_cast %5 : vector<1x8xf32> to vector<8xf32>
    %c2 = arith.constant 2 : index
    %c0_7 = arith.constant 0 : index
    %7 = vector.load %arg2[%c2, %c0_7] : memref<10x8xf32, #tpu.memory_space<vmem>>, vector<1x8xf32>
    %8 = vector.shape_cast %7 : vector<1x8xf32> to vector<8xf32>
    %c3 = arith.constant 3 : index
    %c0_8 = arith.constant 0 : index
    %9 = vector.load %arg2[%c3, %c0_8] : memref<10x8xf32, #tpu.memory_space<vmem>>, vector<1x8xf32>
    %10 = vector.shape_cast %9 : vector<1x8xf32> to vector<8xf32>
    %c4 = arith.constant 4 : index
    %c0_9 = arith.constant 0 : index
    %11 = vector.load %arg2[%c4, %c0_9] : memref<10x8xf32, #tpu.memory_space<vmem>>, vector<1x8xf32>
    %12 = vector.shape_cast %11 : vector<1x8xf32> to vector<8xf32>
    %c5 = arith.constant 5 : index
    %c0_10 = arith.constant 0 : index
    %13 = vector.load %arg2[%c5, %c0_10] : memref<10x8xf32, #tpu.memory_space<vmem>>, vector<1x8xf32>
    %14 = vector.shape_cast %13 : vector<1x8xf32> to vector<8xf32>
    %c6 = arith.constant 6 : index
    %c0_11 = arith.constant 0 : index
    %15 = vector.load %arg2[%c6, %c0_11] : memref<10x8xf32, #tpu.memory_space<vmem>>, vector<1x8xf32>
    %16 = vector.shape_cast %15 : vector<1x8xf32> to vector<8xf32>
    %c7 = arith.constant 7 : index
    %c0_12 = arith.constant 0 : index
    %17 = vector.load %arg2[%c7, %c0_12] : memref<10x8xf32, #tpu.memory_space<vmem>>, vector<1x8xf32>
    %18 = vector.shape_cast %17 : vector<1x8xf32> to vector<8xf32>
    %c8 = arith.constant 8 : index
    %c0_13 = arith.constant 0 : index
    %19 = vector.load %arg2[%c8, %c0_13] : memref<10x8xf32, #tpu.memory_space<vmem>>, vector<1x8xf32>
    %20 = vector.shape_cast %19 : vector<1x8xf32> to vector<8xf32>
    %c9 = arith.constant 9 : index
    %c0_14 = arith.constant 0 : index
    %21 = vector.load %arg2[%c9, %c0_14] : memref<10x8xf32, #tpu.memory_space<vmem>>, vector<1x8xf32>
    %22 = vector.shape_cast %21 : vector<1x8xf32> to vector<8xf32>
    %c0_15 = arith.constant 0 : index
    %c0_16 = arith.constant 0 : index
    %c0_17 = arith.constant 0 : index
    %23 = vector.load %arg1[%c0_15, %c0_16, %c0_17] : memref<2x8x256xf32, #tpu.memory_space<vmem>>, vector<1x8x256xf32>
    %24 = vector.shape_cast %23 : vector<1x8x256xf32> to vector<8x256xf32>
    %25 = tpu.transpose %24, [1, 0] : vector<8x256xf32> -> vector<256x8xf32>
    %26 = vector.shape_cast %25 : vector<256x8xf32> to vector<2x8x16x8xf32>
    %cst_18 = arith.constant dense<0.000000e+00> : vector<2x16x8xf32>
    %27 = vector.multi_reduction <add>, %26, %cst_18 [1] : vector<2x8x16x8xf32> to vector<2x16x8xf32>
    %28 = vector.extract_strided_slice %26 {offsets = [0, 0, 0, 0], sizes = [2, 1, 16, 8], strides = [1, 1, 1, 1]} : vector<2x8x16x8xf32> to vector<2x1x16x8xf32>
    %29 = vector.shape_cast %28 : vector<2x1x16x8xf32> to vector<2x16x8xf32>
    %30 = vector.extract_strided_slice %26 {offsets = [0, 7, 0, 0], sizes = [2, 1, 16, 8], strides = [1, 1, 1, 1]} : vector<2x8x16x8xf32> to vector<2x1x16x8xf32>
    %31 = vector.shape_cast %30 : vector<2x1x16x8xf32> to vector<2x16x8xf32>
    %c0_19 = arith.constant 0 : index
    %c8_20 = arith.constant 8 : index
    %c0_21 = arith.constant 0 : index
    %32 = vector.load %arg4[%c0_19, %c8_20, %c0_21] : memref<2x32x8xf32, #tpu.memory_space<vmem>>, vector<2x16x8xf32>
    tpu.vector_store %arg4[%c0_19, %c8_20, %c0_21], %27 {strides = array<i32>} : memref<2x32x8xf32, #tpu.memory_space<vmem>>, vector<2x16x8xf32>,
    %c0_22 = arith.constant 0 : index
    %c7_23 = arith.constant 7 : index
    %c0_24 = arith.constant 0 : index
    %33 = vector.load %arg4[%c0_22, %c7_23, %c0_24] : memref<2x32x8xf32, #tpu.memory_space<vmem>>, vector<2x16x8xf32>
    %34 = vector.shape_cast %16 : vector<8xf32> to vector<1x1x8xf32>
    %35 = vector.broadcast %34 : vector<1x1x8xf32> to vector<2x16x8xf32>
    %36 = arith.mulf %35, %33 : vector<2x16x8xf32>
    %37 = vector.shape_cast %18 : vector<8xf32> to vector<1x1x8xf32>
    %38 = vector.broadcast %37 : vector<1x1x8xf32> to vector<2x16x8xf32>
    %39 = arith.mulf %38, %27 : vector<2x16x8xf32>
    %40 = arith.addf %36, %39 : vector<2x16x8xf32>
    %c0_25 = arith.constant 0 : index
    %c9_26 = arith.constant 9 : index
    %c0_27 = arith.constant 0 : index
    %41 = vector.load %arg4[%c0_25, %c9_26, %c0_27] : memref<2x32x8xf32, #tpu.memory_space<vmem>>, vector<2x16x8xf32>
    %42 = vector.shape_cast %20 : vector<8xf32> to vector<1x1x8xf32>
    %43 = vector.broadcast %42 : vector<1x1x8xf32> to vector<2x16x8xf32>
    %44 = arith.mulf %43, %41 : vector<2x16x8xf32>
    %45 = arith.addf %40, %44 : vector<2x16x8xf32>
    %46 = vector.shape_cast %45 : vector<2x16x8xf32> to vector<2x2x8x8xf32>
    %cst_28 = arith.constant dense<0.000000e+00> : vector<2x2x8xf32>
    %47 = vector.multi_reduction <add>, %46, %cst_28 [2] : vector<2x2x8x8xf32> to vector<2x2x8xf32>
    %c0_29 = arith.constant 0 : index
    %c8_30 = arith.constant 8 : index
    %c0_31 = arith.constant 0 : index
    %48 = vector.load %arg4[%c0_29, %c8_30, %c0_31] : memref<2x32x8xf32, #tpu.memory_space<vmem>>, vector<2x16x8xf32>
    tpu.vector_store %arg4[%c0_29, %c8_30, %c0_31], %29 {strides = array<i32>} : memref<2x32x8xf32, #tpu.memory_space<vmem>>, vector<2x16x8xf32>,
    %c0_32 = arith.constant 0 : index
    %c7_33 = arith.constant 7 : index
    %c0_34 = arith.constant 0 : index
    %49 = vector.load %arg4[%c0_32, %c7_33, %c0_34] : memref<2x32x8xf32, #tpu.memory_space<vmem>>, vector<2x16x8xf32>
    %50 = vector.shape_cast %10 : vector<8xf32> to vector<1x1x8xf32>
    %51 = vector.broadcast %50 : vector<1x1x8xf32> to vector<2x16x8xf32>
    %52 = arith.mulf %51, %49 : vector<2x16x8xf32>
    %53 = vector.shape_cast %12 : vector<8xf32> to vector<1x1x8xf32>
    %54 = vector.broadcast %53 : vector<1x1x8xf32> to vector<2x16x8xf32>
    %55 = arith.mulf %54, %29 : vector<2x16x8xf32>
    %56 = arith.addf %52, %55 : vector<2x16x8xf32>
    %c0_35 = arith.constant 0 : index
    %c9_36 = arith.constant 9 : index
    %c0_37 = arith.constant 0 : index
    %57 = vector.load %arg4[%c0_35, %c9_36, %c0_37] : memref<2x32x8xf32, #tpu.memory_space<vmem>>, vector<2x16x8xf32>
    %58 = vector.shape_cast %14 : vector<8xf32> to vector<1x1x8xf32>
    %59 = vector.broadcast %58 : vector<1x1x8xf32> to vector<2x16x8xf32>
    %60 = arith.mulf %59, %57 : vector<2x16x8xf32>
    %61 = arith.addf %56, %60 : vector<2x16x8xf32>
    %62 = vector.shape_cast %61 : vector<2x16x8xf32> to vector<2x2x8x8xf32>
    %cst_38 = arith.constant dense<0.000000e+00> : vector<2x2x8xf32>
    %63 = vector.multi_reduction <add>, %62, %cst_38 [2] : vector<2x2x8x8xf32> to vector<2x2x8xf32>
    %c0_39 = arith.constant 0 : index
    %c8_40 = arith.constant 8 : index
    %c0_41 = arith.constant 0 : index
    %64 = vector.load %arg4[%c0_39, %c8_40, %c0_41] : memref<2x32x8xf32, #tpu.memory_space<vmem>>, vector<2x16x8xf32>
    tpu.vector_store %arg4[%c0_39, %c8_40, %c0_41], %31 {strides = array<i32>} : memref<2x32x8xf32, #tpu.memory_space<vmem>>, vector<2x16x8xf32>,
    %c0_42 = arith.constant 0 : index
    %c7_43 = arith.constant 7 : index
    %c0_44 = arith.constant 0 : index
    %65 = vector.load %arg4[%c0_42, %c7_43, %c0_44] : memref<2x32x8xf32, #tpu.memory_space<vmem>>, vector<2x16x8xf32>
    %66 = vector.shape_cast %4 : vector<8xf32> to vector<1x1x8xf32>
    %67 = vector.broadcast %66 : vector<1x1x8xf32> to vector<2x16x8xf32>
    %68 = arith.mulf %67, %65 : vector<2x16x8xf32>
    %69 = vector.shape_cast %6 : vector<8xf32> to vector<1x1x8xf32>
    %70 = vector.broadcast %69 : vector<1x1x8xf32> to vector<2x16x8xf32>
    %71 = arith.mulf %70, %31 : vector<2x16x8xf32>
    %72 = arith.addf %68, %71 : vector<2x16x8xf32>
    %c0_45 = arith.constant 0 : index
    %c9_46 = arith.constant 9 : index
    %c0_47 = arith.constant 0 : index
    %73 = vector.load %arg4[%c0_45, %c9_46, %c0_47] : memref<2x32x8xf32, #tpu.memory_space<vmem>>, vector<2x16x8xf32>
    %74 = vector.shape_cast %8 : vector<8xf32> to vector<1x1x8xf32>
    %75 = vector.broadcast %74 : vector<1x1x8xf32> to vector<2x16x8xf32>
    %76 = arith.mulf %75, %73 : vector<2x16x8xf32>
    %77 = arith.addf %72, %76 : vector<2x16x8xf32>
    %78 = vector.shape_cast %77 : vector<2x16x8xf32> to vector<2x2x8x8xf32>
    %cst_48 = arith.constant dense<0.000000e+00> : vector<2x2x8xf32>
    %79 = vector.multi_reduction <add>, %78, %cst_48 [2] : vector<2x2x8x8xf32> to vector<2x2x8xf32>
    %80 = vector.extract_strided_slice %47 {offsets = [0, 0, 0], sizes = [1, 2, 8], strides = [1, 1, 1]} : vector<2x2x8xf32> to vector<1x2x8xf32>
    %81 = vector.shape_cast %80 : vector<1x2x8xf32> to vector<2x8xf32>
    %82 = vector.extract_strided_slice %63 {offsets = [0, 0, 0], sizes = [1, 2, 8], strides = [1, 1, 1]} : vector<2x2x8xf32> to vector<1x2x8xf32>
    %83 = vector.shape_cast %82 : vector<1x2x8xf32> to vector<2x8xf32>
    %84 = arith.subf %81, %83 : vector<2x8xf32>
    %85 = vector.extract_strided_slice %79 {offsets = [0, 0, 0], sizes = [1, 2, 8], strides = [1, 1, 1]} : vector<2x2x8xf32> to vector<1x2x8xf32>
    %86 = vector.shape_cast %85 : vector<1x2x8xf32> to vector<2x8xf32>
    %87 = arith.subf %84, %86 : vector<2x8xf32>
    %88 = vector.extract_strided_slice %63 {offsets = [1, 0, 0], sizes = [1, 2, 8], strides = [1, 1, 1]} : vector<2x2x8xf32> to vector<1x2x8xf32>
    %89 = vector.shape_cast %88 : vector<1x2x8xf32> to vector<2x8xf32>
    %90 = arith.addf %87, %89 : vector<2x8xf32>
    %cst_49 = arith.constant 1.562500e-02 : f32
    %91 = vector.broadcast %cst_49 : f32 to vector<2x8xf32>
    %92 = arith.mulf %90, %91 : vector<2x8xf32>
    %93 = vector.shape_cast %22 : vector<8xf32> to vector<1x8xf32>
    %94 = vector.broadcast %93 : vector<1x8xf32> to vector<2x8xf32>
    %95 = arith.addf %92, %94 : vector<2x8xf32>
    %c0_50 = arith.constant 0 : index
    %c0_51 = arith.constant 0 : index
    %c0_52 = arith.constant 0 : index
    %96 = vector.load %arg3[%c0_50, %c0_51, %c0_52] : memref<2x4x8xf32, #tpu.memory_space<vmem>>, vector<1x2x8xf32>
    %97 = vector.shape_cast %96 : vector<1x2x8xf32> to vector<2x8xf32>
    %98 = vector.shape_cast %95 : vector<2x8xf32> to vector<1x2x8xf32>
    tpu.vector_store %arg3[%c0_50, %c0_51, %c0_52], %98 {strides = array<i32>} : memref<2x4x8xf32, #tpu.memory_space<vmem>>, vector<1x2x8xf32>,
    %99 = vector.extract_strided_slice %47 {offsets = [1, 0, 0], sizes = [1, 2, 8], strides = [1, 1, 1]} : vector<2x2x8xf32> to vector<1x2x8xf32>
    %100 = vector.shape_cast %99 : vector<1x2x8xf32> to vector<2x8xf32>
    %101 = vector.extract_strided_slice %63 {offsets = [1, 0, 0], sizes = [1, 2, 8], strides = [1, 1, 1]} : vector<2x2x8xf32> to vector<1x2x8xf32>
    %102 = vector.shape_cast %101 : vector<1x2x8xf32> to vector<2x8xf32>
    %103 = arith.subf %100, %102 : vector<2x8xf32>
    %104 = vector.extract_strided_slice %79 {offsets = [1, 0, 0], sizes = [1, 2, 8], strides = [1, 1, 1]} : vector<2x2x8xf32> to vector<1x2x8xf32>
    %105 = vector.shape_cast %104 : vector<1x2x8xf32> to vector<2x8xf32>
    %106 = arith.subf %103, %105 : vector<2x8xf32>
    %107 = vector.extract_strided_slice %79 {offsets = [0, 0, 0], sizes = [1, 2, 8], strides = [1, 1, 1]} : vector<2x2x8xf32> to vector<1x2x8xf32>
    %108 = vector.shape_cast %107 : vector<1x2x8xf32> to vector<2x8xf32>
    %109 = arith.addf %106, %108 : vector<2x8xf32>
    %cst_53 = arith.constant 1.562500e-02 : f32
    %110 = vector.broadcast %cst_53 : f32 to vector<2x8xf32>
    %111 = arith.mulf %109, %110 : vector<2x8xf32>
    %112 = vector.shape_cast %22 : vector<8xf32> to vector<1x8xf32>
    %113 = vector.broadcast %112 : vector<1x8xf32> to vector<2x8xf32>
    %114 = arith.addf %111, %113 : vector<2x8xf32>
    %c0_54 = arith.constant 0 : index
    %c2_55 = arith.constant 2 : index
    %c0_56 = arith.constant 0 : index
    %115 = vector.load %arg3[%c0_54, %c2_55, %c0_56] : memref<2x4x8xf32, #tpu.memory_space<vmem>>, vector<1x2x8xf32>
    %116 = vector.shape_cast %115 : vector<1x2x8xf32> to vector<2x8xf32>
    %117 = vector.shape_cast %114 : vector<2x8xf32> to vector<1x2x8xf32>
    tpu.vector_store %arg3[%c0_54, %c2_55, %c0_56], %117 {strides = array<i32>} : memref<2x4x8xf32, #tpu.memory_space<vmem>>, vector<1x2x8xf32>,
    %c1_57 = arith.constant 1 : index
    %c0_58 = arith.constant 0 : index
    %c0_59 = arith.constant 0 : index
    %118 = vector.load %arg1[%c1_57, %c0_58, %c0_59] : memref<2x8x256xf32, #tpu.memory_space<vmem>>, vector<1x8x256xf32>
    %119 = vector.shape_cast %118 : vector<1x8x256xf32> to vector<8x256xf32>
    %120 = tpu.transpose %119, [1, 0] : vector<8x256xf32> -> vector<256x8xf32>
    %121 = vector.shape_cast %120 : vector<256x8xf32> to vector<2x8x16x8xf32>
    %cst_60 = arith.constant dense<0.000000e+00> : vector<2x16x8xf32>
    %122 = vector.multi_reduction <add>, %121, %cst_60 [1] : vector<2x8x16x8xf32> to vector<2x16x8xf32>
    %123 = vector.extract_strided_slice %121 {offsets = [0, 0, 0, 0], sizes = [2, 1, 16, 8], strides = [1, 1, 1, 1]} : vector<2x8x16x8xf32> to vector<2x1x16x8xf32>
    %124 = vector.shape_cast %123 : vector<2x1x16x8xf32> to vector<2x16x8xf32>
    %125 = vector.extract_strided_slice %121 {offsets = [0, 7, 0, 0], sizes = [2, 1, 16, 8], strides = [1, 1, 1, 1]} : vector<2x8x16x8xf32> to vector<2x1x16x8xf32>
    %126 = vector.shape_cast %125 : vector<2x1x16x8xf32> to vector<2x16x8xf32>
    %c0_61 = arith.constant 0 : index
    %c8_62 = arith.constant 8 : index
    %c0_63 = arith.constant 0 : index
    %127 = vector.load %arg4[%c0_61, %c8_62, %c0_63] : memref<2x32x8xf32, #tpu.memory_space<vmem>>, vector<2x16x8xf32>
    tpu.vector_store %arg4[%c0_61, %c8_62, %c0_63], %122 {strides = array<i32>} : memref<2x32x8xf32, #tpu.memory_space<vmem>>, vector<2x16x8xf32>,
    %c0_64 = arith.constant 0 : index
    %c7_65 = arith.constant 7 : index
    %c0_66 = arith.constant 0 : index
    %128 = vector.load %arg4[%c0_64, %c7_65, %c0_66] : memref<2x32x8xf32, #tpu.memory_space<vmem>>, vector<2x16x8xf32>
    %129 = vector.shape_cast %16 : vector<8xf32> to vector<1x1x8xf32>
    %130 = vector.broadcast %129 : vector<1x1x8xf32> to vector<2x16x8xf32>
    %131 = arith.mulf %130, %128 : vector<2x16x8xf32>
    %132 = vector.shape_cast %18 : vector<8xf32> to vector<1x1x8xf32>
    %133 = vector.broadcast %132 : vector<1x1x8xf32> to vector<2x16x8xf32>
    %134 = arith.mulf %133, %122 : vector<2x16x8xf32>
    %135 = arith.addf %131, %134 : vector<2x16x8xf32>
    %c0_67 = arith.constant 0 : index
    %c9_68 = arith.constant 9 : index
    %c0_69 = arith.constant 0 : index
    %136 = vector.load %arg4[%c0_67, %c9_68, %c0_69] : memref<2x32x8xf32, #tpu.memory_space<vmem>>, vector<2x16x8xf32>
    %137 = vector.shape_cast %20 : vector<8xf32> to vector<1x1x8xf32>
    %138 = vector.broadcast %137 : vector<1x1x8xf32> to vector<2x16x8xf32>
    %139 = arith.mulf %138, %136 : vector<2x16x8xf32>
    %140 = arith.addf %135, %139 : vector<2x16x8xf32>
    %141 = vector.shape_cast %140 : vector<2x16x8xf32> to vector<2x2x8x8xf32>
    %cst_70 = arith.constant dense<0.000000e+00> : vector<2x2x8xf32>
    %142 = vector.multi_reduction <add>, %141, %cst_70 [2] : vector<2x2x8x8xf32> to vector<2x2x8xf32>
    %c0_71 = arith.constant 0 : index
    %c8_72 = arith.constant 8 : index
    %c0_73 = arith.constant 0 : index
    %143 = vector.load %arg4[%c0_71, %c8_72, %c0_73] : memref<2x32x8xf32, #tpu.memory_space<vmem>>, vector<2x16x8xf32>
    tpu.vector_store %arg4[%c0_71, %c8_72, %c0_73], %124 {strides = array<i32>} : memref<2x32x8xf32, #tpu.memory_space<vmem>>, vector<2x16x8xf32>,
    %c0_74 = arith.constant 0 : index
    %c7_75 = arith.constant 7 : index
    %c0_76 = arith.constant 0 : index
    %144 = vector.load %arg4[%c0_74, %c7_75, %c0_76] : memref<2x32x8xf32, #tpu.memory_space<vmem>>, vector<2x16x8xf32>
    %145 = vector.shape_cast %10 : vector<8xf32> to vector<1x1x8xf32>
    %146 = vector.broadcast %145 : vector<1x1x8xf32> to vector<2x16x8xf32>
    %147 = arith.mulf %146, %144 : vector<2x16x8xf32>
    %148 = vector.shape_cast %12 : vector<8xf32> to vector<1x1x8xf32>
    %149 = vector.broadcast %148 : vector<1x1x8xf32> to vector<2x16x8xf32>
    %150 = arith.mulf %149, %124 : vector<2x16x8xf32>
    %151 = arith.addf %147, %150 : vector<2x16x8xf32>
    %c0_77 = arith.constant 0 : index
    %c9_78 = arith.constant 9 : index
    %c0_79 = arith.constant 0 : index
    %152 = vector.load %arg4[%c0_77, %c9_78, %c0_79] : memref<2x32x8xf32, #tpu.memory_space<vmem>>, vector<2x16x8xf32>
    %153 = vector.shape_cast %14 : vector<8xf32> to vector<1x1x8xf32>
    %154 = vector.broadcast %153 : vector<1x1x8xf32> to vector<2x16x8xf32>
    %155 = arith.mulf %154, %152 : vector<2x16x8xf32>
    %156 = arith.addf %151, %155 : vector<2x16x8xf32>
    %157 = vector.shape_cast %156 : vector<2x16x8xf32> to vector<2x2x8x8xf32>
    %cst_80 = arith.constant dense<0.000000e+00> : vector<2x2x8xf32>
    %158 = vector.multi_reduction <add>, %157, %cst_80 [2] : vector<2x2x8x8xf32> to vector<2x2x8xf32>
    %c0_81 = arith.constant 0 : index
    %c8_82 = arith.constant 8 : index
    %c0_83 = arith.constant 0 : index
    %159 = vector.load %arg4[%c0_81, %c8_82, %c0_83] : memref<2x32x8xf32, #tpu.memory_space<vmem>>, vector<2x16x8xf32>
    tpu.vector_store %arg4[%c0_81, %c8_82, %c0_83], %126 {strides = array<i32>} : memref<2x32x8xf32, #tpu.memory_space<vmem>>, vector<2x16x8xf32>,
    %c0_84 = arith.constant 0 : index
    %c7_85 = arith.constant 7 : index
    %c0_86 = arith.constant 0 : index
    %160 = vector.load %arg4[%c0_84, %c7_85, %c0_86] : memref<2x32x8xf32, #tpu.memory_space<vmem>>, vector<2x16x8xf32>
    %161 = vector.shape_cast %4 : vector<8xf32> to vector<1x1x8xf32>
    %162 = vector.broadcast %161 : vector<1x1x8xf32> to vector<2x16x8xf32>
    %163 = arith.mulf %162, %160 : vector<2x16x8xf32>
    %164 = vector.shape_cast %6 : vector<8xf32> to vector<1x1x8xf32>
    %165 = vector.broadcast %164 : vector<1x1x8xf32> to vector<2x16x8xf32>
    %166 = arith.mulf %165, %126 : vector<2x16x8xf32>
    %167 = arith.addf %163, %166 : vector<2x16x8xf32>
    %c0_87 = arith.constant 0 : index
    %c9_88 = arith.constant 9 : index
    %c0_89 = arith.constant 0 : index
    %168 = vector.load %arg4[%c0_87, %c9_88, %c0_89] : memref<2x32x8xf32, #tpu.memory_space<vmem>>, vector<2x16x8xf32>
    %169 = vector.shape_cast %8 : vector<8xf32> to vector<1x1x8xf32>
    %170 = vector.broadcast %169 : vector<1x1x8xf32> to vector<2x16x8xf32>
    %171 = arith.mulf %170, %168 : vector<2x16x8xf32>
    %172 = arith.addf %167, %171 : vector<2x16x8xf32>
    %173 = vector.shape_cast %172 : vector<2x16x8xf32> to vector<2x2x8x8xf32>
    %cst_90 = arith.constant dense<0.000000e+00> : vector<2x2x8xf32>
    %174 = vector.multi_reduction <add>, %173, %cst_90 [2] : vector<2x2x8x8xf32> to vector<2x2x8xf32>
    %175 = vector.extract_strided_slice %142 {offsets = [0, 0, 0], sizes = [1, 2, 8], strides = [1, 1, 1]} : vector<2x2x8xf32> to vector<1x2x8xf32>
    %176 = vector.shape_cast %175 : vector<1x2x8xf32> to vector<2x8xf32>
    %177 = vector.extract_strided_slice %158 {offsets = [0, 0, 0], sizes = [1, 2, 8], strides = [1, 1, 1]} : vector<2x2x8xf32> to vector<1x2x8xf32>
    %178 = vector.shape_cast %177 : vector<1x2x8xf32> to vector<2x8xf32>
    %179 = arith.subf %176, %178 : vector<2x8xf32>
    %180 = vector.extract_strided_slice %174 {offsets = [0, 0, 0], sizes = [1, 2, 8], strides = [1, 1, 1]} : vector<2x2x8xf32> to vector<1x2x8xf32>
    %181 = vector.shape_cast %180 : vector<1x2x8xf32> to vector<2x8xf32>
    %182 = arith.subf %179, %181 : vector<2x8xf32>
    %183 = vector.extract_strided_slice %158 {offsets = [1, 0, 0], sizes = [1, 2, 8], strides = [1, 1, 1]} : vector<2x2x8xf32> to vector<1x2x8xf32>
    %184 = vector.shape_cast %183 : vector<1x2x8xf32> to vector<2x8xf32>
    %185 = arith.addf %182, %184 : vector<2x8xf32>
    %cst_91 = arith.constant 1.562500e-02 : f32
    %186 = vector.broadcast %cst_91 : f32 to vector<2x8xf32>
    %187 = arith.mulf %185, %186 : vector<2x8xf32>
    %188 = vector.shape_cast %22 : vector<8xf32> to vector<1x8xf32>
    %189 = vector.broadcast %188 : vector<1x8xf32> to vector<2x8xf32>
    %190 = arith.addf %187, %189 : vector<2x8xf32>
    %c1_92 = arith.constant 1 : index
    %c0_93 = arith.constant 0 : index
    %c0_94 = arith.constant 0 : index
    %191 = vector.load %arg3[%c1_92, %c0_93, %c0_94] : memref<2x4x8xf32, #tpu.memory_space<vmem>>, vector<1x2x8xf32>
    %192 = vector.shape_cast %191 : vector<1x2x8xf32> to vector<2x8xf32>
    %193 = vector.shape_cast %190 : vector<2x8xf32> to vector<1x2x8xf32>
    tpu.vector_store %arg3[%c1_92, %c0_93, %c0_94], %193 {strides = array<i32>} : memref<2x4x8xf32, #tpu.memory_space<vmem>>, vector<1x2x8xf32>,
    %194 = vector.extract_strided_slice %142 {offsets = [1, 0, 0], sizes = [1, 2, 8], strides = [1, 1, 1]} : vector<2x2x8xf32> to vector<1x2x8xf32>
    %195 = vector.shape_cast %194 : vector<1x2x8xf32> to vector<2x8xf32>
    %196 = vector.extract_strided_slice %158 {offsets = [1, 0, 0], sizes = [1, 2, 8], strides = [1, 1, 1]} : vector<2x2x8xf32> to vector<1x2x8xf32>
    %197 = vector.shape_cast %196 : vector<1x2x8xf32> to vector<2x8xf32>
    %198 = arith.subf %195, %197 : vector<2x8xf32>
    %199 = vector.extract_strided_slice %174 {offsets = [1, 0, 0], sizes = [1, 2, 8], strides = [1, 1, 1]} : vector<2x2x8xf32> to vector<1x2x8xf32>
    %200 = vector.shape_cast %199 : vector<1x2x8xf32> to vector<2x8xf32>
    %201 = arith.subf %198, %200 : vector<2x8xf32>
    %202 = vector.extract_strided_slice %174 {offsets = [0, 0, 0], sizes = [1, 2, 8], strides = [1, 1, 1]} : vector<2x2x8xf32> to vector<1x2x8xf32>
    %203 = vector.shape_cast %202 : vector<1x2x8xf32> to vector<2x8xf32>
    %204 = arith.addf %201, %203 : vector<2x8xf32>
    %cst_95 = arith.constant 1.562500e-02 : f32
    %205 = vector.broadcast %cst_95 : f32 to vector<2x8xf32>
    %206 = arith.mulf %204, %205 : vector<2x8xf32>
    %207 = vector.shape_cast %22 : vector<8xf32> to vector<1x8xf32>
    %208 = vector.broadcast %207 : vector<1x8xf32> to vector<2x8xf32>
    %209 = arith.addf %206, %208 : vector<2x8xf32>
    %c1_96 = arith.constant 1 : index
    %c2_97 = arith.constant 2 : index
    %c0_98 = arith.constant 0 : index
    %210 = vector.load %arg3[%c1_96, %c2_97, %c0_98] : memref<2x4x8xf32, #tpu.memory_space<vmem>>, vector<1x2x8xf32>
    %211 = vector.shape_cast %210 : vector<1x2x8xf32> to vector<2x8xf32>
    %212 = vector.shape_cast %209 : vector<2x8xf32> to vector<1x2x8xf32>
    tpu.vector_store %arg3[%c1_96, %c2_97, %c0_98], %212 {strides = array<i32>} : memref<2x4x8xf32, #tpu.memory_space<vmem>>, vector<1x2x8xf32>,
    return
  }
  func.func @transform_0(%arg0: i32) -> (i32, i32, i32) {
    %c0_i32 = arith.constant 0 : i32
    %c0_i32_0 = arith.constant 0 : i32
    %c0_i32_1 = arith.constant 0 : i32
    return %arg0, %c0_i32, %c0_i32_0 : i32, i32, i32
  }
  func.func @transform_1(%arg0: i32) -> (i32, i32) {
    %c0_i32 = arith.constant 0 : i32
    %c0_i32_0 = arith.constant 0 : i32
    %c0_i32_1 = arith.constant 0 : i32
    return %c0_i32, %c0_i32_0 : i32, i32
  }
  func.func @transform_2(%arg0: i32) -> (i32, i32, i32) {
    %c0_i32 = arith.constant 0 : i32
    %c0_i32_0 = arith.constant 0 : i32
    %c0_i32_1 = arith.constant 0 : i32
    return %arg0, %c0_i32, %c0_i32_0 : i32, i32, i32
  }
}

module attributes {stable_mosaic.version = 11 : i64} {
  func.func @_token_init_kernel(%arg0: i32, %arg1: memref<2x16x16x8xf32, #tpu.memory_space<vmem>>, %arg2: memref<10x8xf32, #tpu.memory_space<vmem>>, %arg3: memref<2x4x8xf32, #tpu.memory_space<vmem>>, %arg4: memref<2x32x8xf32, #tpu.memory_space<vmem>>) attributes {dimension_semantics = [#tpu.dimension_semantics<parallel>], iteration_bounds = array<i64: 1>, scalar_prefetch = 0 : i64, scratch_operands = 1 : i64, tpu.core_type = #tpu.core_type<tc>, window_params = [{transform_indices = @transform_0, window_bounds = array<i64: 2, 16, 16, 8>}, {pipeline_mode = #tpu.pipeline_mode<synchronous>, transform_indices = @transform_1, window_bounds = array<i64: 10, 8>}, {transform_indices = @transform_2, window_bounds = array<i64: 2, 4, 8>}]} {
    %cst = arith.constant 0.000000e+00 : f32
    %0 = vector.broadcast %cst : f32 to vector<2x8x8xf32>
    %c0 = arith.constant 0 : index
    %c0_0 = arith.constant 0 : index
    %c0_1 = arith.constant 0 : index
    %1 = vector.load %arg4[%c0, %c0_0, %c0_1] : memref<2x32x8xf32, #tpu.memory_space<vmem>>, vector<2x8x8xf32>
    tpu.vector_store %arg4[%c0, %c0_0, %c0_1], %0 {strides = array<i32>} : memref<2x32x8xf32, #tpu.memory_space<vmem>>, vector<2x8x8xf32>,
    %c0_2 = arith.constant 0 : index
    %c24 = arith.constant 24 : index
    %c0_3 = arith.constant 0 : index
    %2 = vector.load %arg4[%c0_2, %c24, %c0_3] : memref<2x32x8xf32, #tpu.memory_space<vmem>>, vector<2x8x8xf32>
    tpu.vector_store %arg4[%c0_2, %c24, %c0_3], %0 {strides = array<i32>} : memref<2x32x8xf32, #tpu.memory_space<vmem>>, vector<2x8x8xf32>,
    %c0_4 = arith.constant 0 : index
    %c0_5 = arith.constant 0 : index
    %3 = vector.load %arg2[%c0_4, %c0_5] : memref<10x8xf32, #tpu.memory_space<vmem>>, vector<1x8xf32>
    %4 = vector.shape_cast %3 : vector<1x8xf32> to vector<8xf32>
    %c1 = arith.constant 1 : index
    %c0_6 = arith.constant 0 : index
    %5 = vector.load %arg2[%c1, %c0_6] : memref<10x8xf32, #tpu.memory_space<vmem>>, vector<1x8xf32>
    %6 = vector.shape_cast %5 : vector<1x8xf32> to vector<8xf32>
    %c2 = arith.constant 2 : index
    %c0_7 = arith.constant 0 : index
    %7 = vector.load %arg2[%c2, %c0_7] : memref<10x8xf32, #tpu.memory_space<vmem>>, vector<1x8xf32>
    %8 = vector.shape_cast %7 : vector<1x8xf32> to vector<8xf32>
    %c3 = arith.constant 3 : index
    %c0_8 = arith.constant 0 : index
    %9 = vector.load %arg2[%c3, %c0_8] : memref<10x8xf32, #tpu.memory_space<vmem>>, vector<1x8xf32>
    %10 = vector.shape_cast %9 : vector<1x8xf32> to vector<8xf32>
    %c4 = arith.constant 4 : index
    %c0_9 = arith.constant 0 : index
    %11 = vector.load %arg2[%c4, %c0_9] : memref<10x8xf32, #tpu.memory_space<vmem>>, vector<1x8xf32>
    %12 = vector.shape_cast %11 : vector<1x8xf32> to vector<8xf32>
    %c5 = arith.constant 5 : index
    %c0_10 = arith.constant 0 : index
    %13 = vector.load %arg2[%c5, %c0_10] : memref<10x8xf32, #tpu.memory_space<vmem>>, vector<1x8xf32>
    %14 = vector.shape_cast %13 : vector<1x8xf32> to vector<8xf32>
    %c6 = arith.constant 6 : index
    %c0_11 = arith.constant 0 : index
    %15 = vector.load %arg2[%c6, %c0_11] : memref<10x8xf32, #tpu.memory_space<vmem>>, vector<1x8xf32>
    %16 = vector.shape_cast %15 : vector<1x8xf32> to vector<8xf32>
    %c7 = arith.constant 7 : index
    %c0_12 = arith.constant 0 : index
    %17 = vector.load %arg2[%c7, %c0_12] : memref<10x8xf32, #tpu.memory_space<vmem>>, vector<1x8xf32>
    %18 = vector.shape_cast %17 : vector<1x8xf32> to vector<8xf32>
    %c8 = arith.constant 8 : index
    %c0_13 = arith.constant 0 : index
    %19 = vector.load %arg2[%c8, %c0_13] : memref<10x8xf32, #tpu.memory_space<vmem>>, vector<1x8xf32>
    %20 = vector.shape_cast %19 : vector<1x8xf32> to vector<8xf32>
    %c9 = arith.constant 9 : index
    %c0_14 = arith.constant 0 : index
    %21 = vector.load %arg2[%c9, %c0_14] : memref<10x8xf32, #tpu.memory_space<vmem>>, vector<1x8xf32>
    %22 = vector.shape_cast %21 : vector<1x8xf32> to vector<8xf32>
    %c0_15 = arith.constant 0 : index
    %c0_16 = arith.constant 0 : index
    %c0_17 = arith.constant 0 : index
    %c0_18 = arith.constant 0 : index
    %23 = vector.load %arg1[%c0_15, %c0_16, %c0_17, %c0_18] : memref<2x16x16x8xf32, #tpu.memory_space<vmem>>, vector<1x16x16x8xf32>
    %24 = vector.shape_cast %23 : vector<1x16x16x8xf32> to vector<16x16x8xf32>
    %25 = vector.shape_cast %24 : vector<16x16x8xf32> to vector<2x8x16x8xf32>
    %cst_19 = arith.constant dense<0.000000e+00> : vector<2x16x8xf32>
    %26 = vector.multi_reduction <add>, %25, %cst_19 [1] : vector<2x8x16x8xf32> to vector<2x16x8xf32>
    %27 = vector.extract_strided_slice %25 {offsets = [0, 0, 0, 0], sizes = [2, 1, 16, 8], strides = [1, 1, 1, 1]} : vector<2x8x16x8xf32> to vector<2x1x16x8xf32>
    %28 = vector.shape_cast %27 : vector<2x1x16x8xf32> to vector<2x16x8xf32>
    %29 = vector.extract_strided_slice %25 {offsets = [0, 7, 0, 0], sizes = [2, 1, 16, 8], strides = [1, 1, 1, 1]} : vector<2x8x16x8xf32> to vector<2x1x16x8xf32>
    %30 = vector.shape_cast %29 : vector<2x1x16x8xf32> to vector<2x16x8xf32>
    %c0_20 = arith.constant 0 : index
    %c8_21 = arith.constant 8 : index
    %c0_22 = arith.constant 0 : index
    %31 = vector.load %arg4[%c0_20, %c8_21, %c0_22] : memref<2x32x8xf32, #tpu.memory_space<vmem>>, vector<2x16x8xf32>
    tpu.vector_store %arg4[%c0_20, %c8_21, %c0_22], %26 {strides = array<i32>} : memref<2x32x8xf32, #tpu.memory_space<vmem>>, vector<2x16x8xf32>,
    %c0_23 = arith.constant 0 : index
    %c7_24 = arith.constant 7 : index
    %c0_25 = arith.constant 0 : index
    %32 = vector.load %arg4[%c0_23, %c7_24, %c0_25] : memref<2x32x8xf32, #tpu.memory_space<vmem>>, vector<2x16x8xf32>
    %33 = vector.shape_cast %16 : vector<8xf32> to vector<1x1x8xf32>
    %34 = vector.broadcast %33 : vector<1x1x8xf32> to vector<2x16x8xf32>
    %35 = arith.mulf %34, %32 : vector<2x16x8xf32>
    %36 = vector.shape_cast %18 : vector<8xf32> to vector<1x1x8xf32>
    %37 = vector.broadcast %36 : vector<1x1x8xf32> to vector<2x16x8xf32>
    %38 = arith.mulf %37, %26 : vector<2x16x8xf32>
    %39 = arith.addf %35, %38 : vector<2x16x8xf32>
    %c0_26 = arith.constant 0 : index
    %c9_27 = arith.constant 9 : index
    %c0_28 = arith.constant 0 : index
    %40 = vector.load %arg4[%c0_26, %c9_27, %c0_28] : memref<2x32x8xf32, #tpu.memory_space<vmem>>, vector<2x16x8xf32>
    %41 = vector.shape_cast %20 : vector<8xf32> to vector<1x1x8xf32>
    %42 = vector.broadcast %41 : vector<1x1x8xf32> to vector<2x16x8xf32>
    %43 = arith.mulf %42, %40 : vector<2x16x8xf32>
    %44 = arith.addf %39, %43 : vector<2x16x8xf32>
    %45 = vector.shape_cast %44 : vector<2x16x8xf32> to vector<2x2x8x8xf32>
    %cst_29 = arith.constant dense<0.000000e+00> : vector<2x2x8xf32>
    %46 = vector.multi_reduction <add>, %45, %cst_29 [2] : vector<2x2x8x8xf32> to vector<2x2x8xf32>
    %c0_30 = arith.constant 0 : index
    %c8_31 = arith.constant 8 : index
    %c0_32 = arith.constant 0 : index
    %47 = vector.load %arg4[%c0_30, %c8_31, %c0_32] : memref<2x32x8xf32, #tpu.memory_space<vmem>>, vector<2x16x8xf32>
    tpu.vector_store %arg4[%c0_30, %c8_31, %c0_32], %28 {strides = array<i32>} : memref<2x32x8xf32, #tpu.memory_space<vmem>>, vector<2x16x8xf32>,
    %c0_33 = arith.constant 0 : index
    %c7_34 = arith.constant 7 : index
    %c0_35 = arith.constant 0 : index
    %48 = vector.load %arg4[%c0_33, %c7_34, %c0_35] : memref<2x32x8xf32, #tpu.memory_space<vmem>>, vector<2x16x8xf32>
    %49 = vector.shape_cast %10 : vector<8xf32> to vector<1x1x8xf32>
    %50 = vector.broadcast %49 : vector<1x1x8xf32> to vector<2x16x8xf32>
    %51 = arith.mulf %50, %48 : vector<2x16x8xf32>
    %52 = vector.shape_cast %12 : vector<8xf32> to vector<1x1x8xf32>
    %53 = vector.broadcast %52 : vector<1x1x8xf32> to vector<2x16x8xf32>
    %54 = arith.mulf %53, %28 : vector<2x16x8xf32>
    %55 = arith.addf %51, %54 : vector<2x16x8xf32>
    %c0_36 = arith.constant 0 : index
    %c9_37 = arith.constant 9 : index
    %c0_38 = arith.constant 0 : index
    %56 = vector.load %arg4[%c0_36, %c9_37, %c0_38] : memref<2x32x8xf32, #tpu.memory_space<vmem>>, vector<2x16x8xf32>
    %57 = vector.shape_cast %14 : vector<8xf32> to vector<1x1x8xf32>
    %58 = vector.broadcast %57 : vector<1x1x8xf32> to vector<2x16x8xf32>
    %59 = arith.mulf %58, %56 : vector<2x16x8xf32>
    %60 = arith.addf %55, %59 : vector<2x16x8xf32>
    %61 = vector.shape_cast %60 : vector<2x16x8xf32> to vector<2x2x8x8xf32>
    %cst_39 = arith.constant dense<0.000000e+00> : vector<2x2x8xf32>
    %62 = vector.multi_reduction <add>, %61, %cst_39 [2] : vector<2x2x8x8xf32> to vector<2x2x8xf32>
    %c0_40 = arith.constant 0 : index
    %c8_41 = arith.constant 8 : index
    %c0_42 = arith.constant 0 : index
    %63 = vector.load %arg4[%c0_40, %c8_41, %c0_42] : memref<2x32x8xf32, #tpu.memory_space<vmem>>, vector<2x16x8xf32>
    tpu.vector_store %arg4[%c0_40, %c8_41, %c0_42], %30 {strides = array<i32>} : memref<2x32x8xf32, #tpu.memory_space<vmem>>, vector<2x16x8xf32>,
    %c0_43 = arith.constant 0 : index
    %c7_44 = arith.constant 7 : index
    %c0_45 = arith.constant 0 : index
    %64 = vector.load %arg4[%c0_43, %c7_44, %c0_45] : memref<2x32x8xf32, #tpu.memory_space<vmem>>, vector<2x16x8xf32>
    %65 = vector.shape_cast %4 : vector<8xf32> to vector<1x1x8xf32>
    %66 = vector.broadcast %65 : vector<1x1x8xf32> to vector<2x16x8xf32>
    %67 = arith.mulf %66, %64 : vector<2x16x8xf32>
    %68 = vector.shape_cast %6 : vector<8xf32> to vector<1x1x8xf32>
    %69 = vector.broadcast %68 : vector<1x1x8xf32> to vector<2x16x8xf32>
    %70 = arith.mulf %69, %30 : vector<2x16x8xf32>
    %71 = arith.addf %67, %70 : vector<2x16x8xf32>
    %c0_46 = arith.constant 0 : index
    %c9_47 = arith.constant 9 : index
    %c0_48 = arith.constant 0 : index
    %72 = vector.load %arg4[%c0_46, %c9_47, %c0_48] : memref<2x32x8xf32, #tpu.memory_space<vmem>>, vector<2x16x8xf32>
    %73 = vector.shape_cast %8 : vector<8xf32> to vector<1x1x8xf32>
    %74 = vector.broadcast %73 : vector<1x1x8xf32> to vector<2x16x8xf32>
    %75 = arith.mulf %74, %72 : vector<2x16x8xf32>
    %76 = arith.addf %71, %75 : vector<2x16x8xf32>
    %77 = vector.shape_cast %76 : vector<2x16x8xf32> to vector<2x2x8x8xf32>
    %cst_49 = arith.constant dense<0.000000e+00> : vector<2x2x8xf32>
    %78 = vector.multi_reduction <add>, %77, %cst_49 [2] : vector<2x2x8x8xf32> to vector<2x2x8xf32>
    %79 = vector.extract_strided_slice %46 {offsets = [0, 0, 0], sizes = [1, 2, 8], strides = [1, 1, 1]} : vector<2x2x8xf32> to vector<1x2x8xf32>
    %80 = vector.shape_cast %79 : vector<1x2x8xf32> to vector<2x8xf32>
    %81 = vector.extract_strided_slice %62 {offsets = [0, 0, 0], sizes = [1, 2, 8], strides = [1, 1, 1]} : vector<2x2x8xf32> to vector<1x2x8xf32>
    %82 = vector.shape_cast %81 : vector<1x2x8xf32> to vector<2x8xf32>
    %83 = arith.subf %80, %82 : vector<2x8xf32>
    %84 = vector.extract_strided_slice %78 {offsets = [0, 0, 0], sizes = [1, 2, 8], strides = [1, 1, 1]} : vector<2x2x8xf32> to vector<1x2x8xf32>
    %85 = vector.shape_cast %84 : vector<1x2x8xf32> to vector<2x8xf32>
    %86 = arith.subf %83, %85 : vector<2x8xf32>
    %87 = vector.extract_strided_slice %62 {offsets = [1, 0, 0], sizes = [1, 2, 8], strides = [1, 1, 1]} : vector<2x2x8xf32> to vector<1x2x8xf32>
    %88 = vector.shape_cast %87 : vector<1x2x8xf32> to vector<2x8xf32>
    %89 = arith.addf %86, %88 : vector<2x8xf32>
    %cst_50 = arith.constant 1.562500e-02 : f32
    %90 = vector.broadcast %cst_50 : f32 to vector<2x8xf32>
    %91 = arith.mulf %89, %90 : vector<2x8xf32>
    %92 = vector.shape_cast %22 : vector<8xf32> to vector<1x8xf32>
    %93 = vector.broadcast %92 : vector<1x8xf32> to vector<2x8xf32>
    %94 = arith.addf %91, %93 : vector<2x8xf32>
    %c0_51 = arith.constant 0 : index
    %c0_52 = arith.constant 0 : index
    %c0_53 = arith.constant 0 : index
    %95 = vector.load %arg3[%c0_51, %c0_52, %c0_53] : memref<2x4x8xf32, #tpu.memory_space<vmem>>, vector<1x2x8xf32>
    %96 = vector.shape_cast %95 : vector<1x2x8xf32> to vector<2x8xf32>
    %97 = vector.shape_cast %94 : vector<2x8xf32> to vector<1x2x8xf32>
    tpu.vector_store %arg3[%c0_51, %c0_52, %c0_53], %97 {strides = array<i32>} : memref<2x4x8xf32, #tpu.memory_space<vmem>>, vector<1x2x8xf32>,
    %98 = vector.extract_strided_slice %46 {offsets = [1, 0, 0], sizes = [1, 2, 8], strides = [1, 1, 1]} : vector<2x2x8xf32> to vector<1x2x8xf32>
    %99 = vector.shape_cast %98 : vector<1x2x8xf32> to vector<2x8xf32>
    %100 = vector.extract_strided_slice %62 {offsets = [1, 0, 0], sizes = [1, 2, 8], strides = [1, 1, 1]} : vector<2x2x8xf32> to vector<1x2x8xf32>
    %101 = vector.shape_cast %100 : vector<1x2x8xf32> to vector<2x8xf32>
    %102 = arith.subf %99, %101 : vector<2x8xf32>
    %103 = vector.extract_strided_slice %78 {offsets = [1, 0, 0], sizes = [1, 2, 8], strides = [1, 1, 1]} : vector<2x2x8xf32> to vector<1x2x8xf32>
    %104 = vector.shape_cast %103 : vector<1x2x8xf32> to vector<2x8xf32>
    %105 = arith.subf %102, %104 : vector<2x8xf32>
    %106 = vector.extract_strided_slice %78 {offsets = [0, 0, 0], sizes = [1, 2, 8], strides = [1, 1, 1]} : vector<2x2x8xf32> to vector<1x2x8xf32>
    %107 = vector.shape_cast %106 : vector<1x2x8xf32> to vector<2x8xf32>
    %108 = arith.addf %105, %107 : vector<2x8xf32>
    %cst_54 = arith.constant 1.562500e-02 : f32
    %109 = vector.broadcast %cst_54 : f32 to vector<2x8xf32>
    %110 = arith.mulf %108, %109 : vector<2x8xf32>
    %111 = vector.shape_cast %22 : vector<8xf32> to vector<1x8xf32>
    %112 = vector.broadcast %111 : vector<1x8xf32> to vector<2x8xf32>
    %113 = arith.addf %110, %112 : vector<2x8xf32>
    %c0_55 = arith.constant 0 : index
    %c2_56 = arith.constant 2 : index
    %c0_57 = arith.constant 0 : index
    %114 = vector.load %arg3[%c0_55, %c2_56, %c0_57] : memref<2x4x8xf32, #tpu.memory_space<vmem>>, vector<1x2x8xf32>
    %115 = vector.shape_cast %114 : vector<1x2x8xf32> to vector<2x8xf32>
    %116 = vector.shape_cast %113 : vector<2x8xf32> to vector<1x2x8xf32>
    tpu.vector_store %arg3[%c0_55, %c2_56, %c0_57], %116 {strides = array<i32>} : memref<2x4x8xf32, #tpu.memory_space<vmem>>, vector<1x2x8xf32>,
    %c1_58 = arith.constant 1 : index
    %c0_59 = arith.constant 0 : index
    %c0_60 = arith.constant 0 : index
    %c0_61 = arith.constant 0 : index
    %117 = vector.load %arg1[%c1_58, %c0_59, %c0_60, %c0_61] : memref<2x16x16x8xf32, #tpu.memory_space<vmem>>, vector<1x16x16x8xf32>
    %118 = vector.shape_cast %117 : vector<1x16x16x8xf32> to vector<16x16x8xf32>
    %119 = vector.shape_cast %118 : vector<16x16x8xf32> to vector<2x8x16x8xf32>
    %cst_62 = arith.constant dense<0.000000e+00> : vector<2x16x8xf32>
    %120 = vector.multi_reduction <add>, %119, %cst_62 [1] : vector<2x8x16x8xf32> to vector<2x16x8xf32>
    %121 = vector.extract_strided_slice %119 {offsets = [0, 0, 0, 0], sizes = [2, 1, 16, 8], strides = [1, 1, 1, 1]} : vector<2x8x16x8xf32> to vector<2x1x16x8xf32>
    %122 = vector.shape_cast %121 : vector<2x1x16x8xf32> to vector<2x16x8xf32>
    %123 = vector.extract_strided_slice %119 {offsets = [0, 7, 0, 0], sizes = [2, 1, 16, 8], strides = [1, 1, 1, 1]} : vector<2x8x16x8xf32> to vector<2x1x16x8xf32>
    %124 = vector.shape_cast %123 : vector<2x1x16x8xf32> to vector<2x16x8xf32>
    %c0_63 = arith.constant 0 : index
    %c8_64 = arith.constant 8 : index
    %c0_65 = arith.constant 0 : index
    %125 = vector.load %arg4[%c0_63, %c8_64, %c0_65] : memref<2x32x8xf32, #tpu.memory_space<vmem>>, vector<2x16x8xf32>
    tpu.vector_store %arg4[%c0_63, %c8_64, %c0_65], %120 {strides = array<i32>} : memref<2x32x8xf32, #tpu.memory_space<vmem>>, vector<2x16x8xf32>,
    %c0_66 = arith.constant 0 : index
    %c7_67 = arith.constant 7 : index
    %c0_68 = arith.constant 0 : index
    %126 = vector.load %arg4[%c0_66, %c7_67, %c0_68] : memref<2x32x8xf32, #tpu.memory_space<vmem>>, vector<2x16x8xf32>
    %127 = vector.shape_cast %16 : vector<8xf32> to vector<1x1x8xf32>
    %128 = vector.broadcast %127 : vector<1x1x8xf32> to vector<2x16x8xf32>
    %129 = arith.mulf %128, %126 : vector<2x16x8xf32>
    %130 = vector.shape_cast %18 : vector<8xf32> to vector<1x1x8xf32>
    %131 = vector.broadcast %130 : vector<1x1x8xf32> to vector<2x16x8xf32>
    %132 = arith.mulf %131, %120 : vector<2x16x8xf32>
    %133 = arith.addf %129, %132 : vector<2x16x8xf32>
    %c0_69 = arith.constant 0 : index
    %c9_70 = arith.constant 9 : index
    %c0_71 = arith.constant 0 : index
    %134 = vector.load %arg4[%c0_69, %c9_70, %c0_71] : memref<2x32x8xf32, #tpu.memory_space<vmem>>, vector<2x16x8xf32>
    %135 = vector.shape_cast %20 : vector<8xf32> to vector<1x1x8xf32>
    %136 = vector.broadcast %135 : vector<1x1x8xf32> to vector<2x16x8xf32>
    %137 = arith.mulf %136, %134 : vector<2x16x8xf32>
    %138 = arith.addf %133, %137 : vector<2x16x8xf32>
    %139 = vector.shape_cast %138 : vector<2x16x8xf32> to vector<2x2x8x8xf32>
    %cst_72 = arith.constant dense<0.000000e+00> : vector<2x2x8xf32>
    %140 = vector.multi_reduction <add>, %139, %cst_72 [2] : vector<2x2x8x8xf32> to vector<2x2x8xf32>
    %c0_73 = arith.constant 0 : index
    %c8_74 = arith.constant 8 : index
    %c0_75 = arith.constant 0 : index
    %141 = vector.load %arg4[%c0_73, %c8_74, %c0_75] : memref<2x32x8xf32, #tpu.memory_space<vmem>>, vector<2x16x8xf32>
    tpu.vector_store %arg4[%c0_73, %c8_74, %c0_75], %122 {strides = array<i32>} : memref<2x32x8xf32, #tpu.memory_space<vmem>>, vector<2x16x8xf32>,
    %c0_76 = arith.constant 0 : index
    %c7_77 = arith.constant 7 : index
    %c0_78 = arith.constant 0 : index
    %142 = vector.load %arg4[%c0_76, %c7_77, %c0_78] : memref<2x32x8xf32, #tpu.memory_space<vmem>>, vector<2x16x8xf32>
    %143 = vector.shape_cast %10 : vector<8xf32> to vector<1x1x8xf32>
    %144 = vector.broadcast %143 : vector<1x1x8xf32> to vector<2x16x8xf32>
    %145 = arith.mulf %144, %142 : vector<2x16x8xf32>
    %146 = vector.shape_cast %12 : vector<8xf32> to vector<1x1x8xf32>
    %147 = vector.broadcast %146 : vector<1x1x8xf32> to vector<2x16x8xf32>
    %148 = arith.mulf %147, %122 : vector<2x16x8xf32>
    %149 = arith.addf %145, %148 : vector<2x16x8xf32>
    %c0_79 = arith.constant 0 : index
    %c9_80 = arith.constant 9 : index
    %c0_81 = arith.constant 0 : index
    %150 = vector.load %arg4[%c0_79, %c9_80, %c0_81] : memref<2x32x8xf32, #tpu.memory_space<vmem>>, vector<2x16x8xf32>
    %151 = vector.shape_cast %14 : vector<8xf32> to vector<1x1x8xf32>
    %152 = vector.broadcast %151 : vector<1x1x8xf32> to vector<2x16x8xf32>
    %153 = arith.mulf %152, %150 : vector<2x16x8xf32>
    %154 = arith.addf %149, %153 : vector<2x16x8xf32>
    %155 = vector.shape_cast %154 : vector<2x16x8xf32> to vector<2x2x8x8xf32>
    %cst_82 = arith.constant dense<0.000000e+00> : vector<2x2x8xf32>
    %156 = vector.multi_reduction <add>, %155, %cst_82 [2] : vector<2x2x8x8xf32> to vector<2x2x8xf32>
    %c0_83 = arith.constant 0 : index
    %c8_84 = arith.constant 8 : index
    %c0_85 = arith.constant 0 : index
    %157 = vector.load %arg4[%c0_83, %c8_84, %c0_85] : memref<2x32x8xf32, #tpu.memory_space<vmem>>, vector<2x16x8xf32>
    tpu.vector_store %arg4[%c0_83, %c8_84, %c0_85], %124 {strides = array<i32>} : memref<2x32x8xf32, #tpu.memory_space<vmem>>, vector<2x16x8xf32>,
    %c0_86 = arith.constant 0 : index
    %c7_87 = arith.constant 7 : index
    %c0_88 = arith.constant 0 : index
    %158 = vector.load %arg4[%c0_86, %c7_87, %c0_88] : memref<2x32x8xf32, #tpu.memory_space<vmem>>, vector<2x16x8xf32>
    %159 = vector.shape_cast %4 : vector<8xf32> to vector<1x1x8xf32>
    %160 = vector.broadcast %159 : vector<1x1x8xf32> to vector<2x16x8xf32>
    %161 = arith.mulf %160, %158 : vector<2x16x8xf32>
    %162 = vector.shape_cast %6 : vector<8xf32> to vector<1x1x8xf32>
    %163 = vector.broadcast %162 : vector<1x1x8xf32> to vector<2x16x8xf32>
    %164 = arith.mulf %163, %124 : vector<2x16x8xf32>
    %165 = arith.addf %161, %164 : vector<2x16x8xf32>
    %c0_89 = arith.constant 0 : index
    %c9_90 = arith.constant 9 : index
    %c0_91 = arith.constant 0 : index
    %166 = vector.load %arg4[%c0_89, %c9_90, %c0_91] : memref<2x32x8xf32, #tpu.memory_space<vmem>>, vector<2x16x8xf32>
    %167 = vector.shape_cast %8 : vector<8xf32> to vector<1x1x8xf32>
    %168 = vector.broadcast %167 : vector<1x1x8xf32> to vector<2x16x8xf32>
    %169 = arith.mulf %168, %166 : vector<2x16x8xf32>
    %170 = arith.addf %165, %169 : vector<2x16x8xf32>
    %171 = vector.shape_cast %170 : vector<2x16x8xf32> to vector<2x2x8x8xf32>
    %cst_92 = arith.constant dense<0.000000e+00> : vector<2x2x8xf32>
    %172 = vector.multi_reduction <add>, %171, %cst_92 [2] : vector<2x2x8x8xf32> to vector<2x2x8xf32>
    %173 = vector.extract_strided_slice %140 {offsets = [0, 0, 0], sizes = [1, 2, 8], strides = [1, 1, 1]} : vector<2x2x8xf32> to vector<1x2x8xf32>
    %174 = vector.shape_cast %173 : vector<1x2x8xf32> to vector<2x8xf32>
    %175 = vector.extract_strided_slice %156 {offsets = [0, 0, 0], sizes = [1, 2, 8], strides = [1, 1, 1]} : vector<2x2x8xf32> to vector<1x2x8xf32>
    %176 = vector.shape_cast %175 : vector<1x2x8xf32> to vector<2x8xf32>
    %177 = arith.subf %174, %176 : vector<2x8xf32>
    %178 = vector.extract_strided_slice %172 {offsets = [0, 0, 0], sizes = [1, 2, 8], strides = [1, 1, 1]} : vector<2x2x8xf32> to vector<1x2x8xf32>
    %179 = vector.shape_cast %178 : vector<1x2x8xf32> to vector<2x8xf32>
    %180 = arith.subf %177, %179 : vector<2x8xf32>
    %181 = vector.extract_strided_slice %156 {offsets = [1, 0, 0], sizes = [1, 2, 8], strides = [1, 1, 1]} : vector<2x2x8xf32> to vector<1x2x8xf32>
    %182 = vector.shape_cast %181 : vector<1x2x8xf32> to vector<2x8xf32>
    %183 = arith.addf %180, %182 : vector<2x8xf32>
    %cst_93 = arith.constant 1.562500e-02 : f32
    %184 = vector.broadcast %cst_93 : f32 to vector<2x8xf32>
    %185 = arith.mulf %183, %184 : vector<2x8xf32>
    %186 = vector.shape_cast %22 : vector<8xf32> to vector<1x8xf32>
    %187 = vector.broadcast %186 : vector<1x8xf32> to vector<2x8xf32>
    %188 = arith.addf %185, %187 : vector<2x8xf32>
    %c1_94 = arith.constant 1 : index
    %c0_95 = arith.constant 0 : index
    %c0_96 = arith.constant 0 : index
    %189 = vector.load %arg3[%c1_94, %c0_95, %c0_96] : memref<2x4x8xf32, #tpu.memory_space<vmem>>, vector<1x2x8xf32>
    %190 = vector.shape_cast %189 : vector<1x2x8xf32> to vector<2x8xf32>
    %191 = vector.shape_cast %188 : vector<2x8xf32> to vector<1x2x8xf32>
    tpu.vector_store %arg3[%c1_94, %c0_95, %c0_96], %191 {strides = array<i32>} : memref<2x4x8xf32, #tpu.memory_space<vmem>>, vector<1x2x8xf32>,
    %192 = vector.extract_strided_slice %140 {offsets = [1, 0, 0], sizes = [1, 2, 8], strides = [1, 1, 1]} : vector<2x2x8xf32> to vector<1x2x8xf32>
    %193 = vector.shape_cast %192 : vector<1x2x8xf32> to vector<2x8xf32>
    %194 = vector.extract_strided_slice %156 {offsets = [1, 0, 0], sizes = [1, 2, 8], strides = [1, 1, 1]} : vector<2x2x8xf32> to vector<1x2x8xf32>
    %195 = vector.shape_cast %194 : vector<1x2x8xf32> to vector<2x8xf32>
    %196 = arith.subf %193, %195 : vector<2x8xf32>
    %197 = vector.extract_strided_slice %172 {offsets = [1, 0, 0], sizes = [1, 2, 8], strides = [1, 1, 1]} : vector<2x2x8xf32> to vector<1x2x8xf32>
    %198 = vector.shape_cast %197 : vector<1x2x8xf32> to vector<2x8xf32>
    %199 = arith.subf %196, %198 : vector<2x8xf32>
    %200 = vector.extract_strided_slice %172 {offsets = [0, 0, 0], sizes = [1, 2, 8], strides = [1, 1, 1]} : vector<2x2x8xf32> to vector<1x2x8xf32>
    %201 = vector.shape_cast %200 : vector<1x2x8xf32> to vector<2x8xf32>
    %202 = arith.addf %199, %201 : vector<2x8xf32>
    %cst_97 = arith.constant 1.562500e-02 : f32
    %203 = vector.broadcast %cst_97 : f32 to vector<2x8xf32>
    %204 = arith.mulf %202, %203 : vector<2x8xf32>
    %205 = vector.shape_cast %22 : vector<8xf32> to vector<1x8xf32>
    %206 = vector.broadcast %205 : vector<1x8xf32> to vector<2x8xf32>
    %207 = arith.addf %204, %206 : vector<2x8xf32>
    %c1_98 = arith.constant 1 : index
    %c2_99 = arith.constant 2 : index
    %c0_100 = arith.constant 0 : index
    %208 = vector.load %arg3[%c1_98, %c2_99, %c0_100] : memref<2x4x8xf32, #tpu.memory_space<vmem>>, vector<1x2x8xf32>
    %209 = vector.shape_cast %208 : vector<1x2x8xf32> to vector<2x8xf32>
    %210 = vector.shape_cast %207 : vector<2x8xf32> to vector<1x2x8xf32>
    tpu.vector_store %arg3[%c1_98, %c2_99, %c0_100], %210 {strides = array<i32>} : memref<2x4x8xf32, #tpu.memory_space<vmem>>, vector<1x2x8xf32>,
    return
  }
  func.func @transform_0(%arg0: i32) -> (i32, i32, i32, i32) {
    %c0_i32 = arith.constant 0 : i32
    %c0_i32_0 = arith.constant 0 : i32
    %c0_i32_1 = arith.constant 0 : i32
    %c0_i32_2 = arith.constant 0 : i32
    return %arg0, %c0_i32, %c0_i32_0, %c0_i32_1 : i32, i32, i32, i32
  }
  func.func @transform_1(%arg0: i32) -> (i32, i32) {
    %c0_i32 = arith.constant 0 : i32
    %c0_i32_0 = arith.constant 0 : i32
    %c0_i32_1 = arith.constant 0 : i32
    return %c0_i32, %c0_i32_0 : i32, i32
  }
  func.func @transform_2(%arg0: i32) -> (i32, i32, i32) {
    %c0_i32 = arith.constant 0 : i32
    %c0_i32_0 = arith.constant 0 : i32
    %c0_i32_1 = arith.constant 0 : i32
    return %arg0, %c0_i32, %c0_i32_0 : i32, i32, i32
  }
}

</mosaic_0001>

<llo_original>
// kernel: tpu_custom_call.1
$region0: #{tpu_custom_call.1}
  #allocation0 [shape = 'u32[]', space=smem, size = 0x4, offset = 0x4, fixed_abs, tag = 'smem constant byte address 0x4 - core index']
  #allocation1 [shape = 'u32[144,128]{1,0:T(1,128)}', space=vmem, size = 0x12000, scoped, tag = 'internal scratch']
  #allocation2 [shape = 'f32[2,32,8]{2,1,0:T(8,128)}', space=vmem, size = 0x8000, scoped, tag = 'scratch operand']
  %s0 = inlined_call_operand.hbm [shape: f32[2,8,256], index: 0, kind: input, shape index: {}]
  %s1 = inlined_call_operand.hbm [shape: f32[10,8], index: 1, kind: input, shape index: {}]
  %s2 = inlined_call_operand.hbm [shape: f32[2,4,8], index: 2, kind: output, shape index: {}]
  %s3 = sld [smem:[#allocation0]]
  $region26: #{tpu_custom_call.1} parent=0
    _
  %s5 = ssub.s32 1, %s3
  %s6 = scalar_select 0, %s5, %s3
  $region1: #{tpu_custom_call.1} parent=0
    #allocation3 [shape = 'u8[16384]{0}', space=vmem, size = 0x4000, scoped, tag = 'input window, operand 0, single buffered']
    #allocation4 [shape = 's32[1]{0}', space=sflag, size = 0x4, scoped, tag = 'scoped memory for tpu_custom_call.1']
    #allocation5 [shape = 's32[1]{0}', space=sflag, size = 0x4, scoped, tag = 'scoped memory for tpu_custom_call.1']
    #allocation6 [shape = 'u8[8192]{0}', space=vmem, size = 0x2000, scoped, tag = 'input window, operand 1, single buffered']
    #allocation7 [shape = 's32[1]{0}', space=sflag, size = 0x4, scoped, tag = 'scoped memory for tpu_custom_call.1']
    #allocation8 [shape = 'u8[4096]{0}', space=vmem, size = 0x1000, scoped, tag = 'output window, operand 0, single buffered']
    %7 = vsyncpa [#allocation4], 0
    %8 = vsyncpa [#allocation7], 0
    %9 = vsyncpa [#allocation5], 0
    // Predicated region
    $region2: #{tpu_custom_call.1} parent=1 // pred_check
      _
    $region3: #{tpu_custom_call.1} parent=1 // pred_check_branch
      %11 = sbr.rel (0) target = $region5
    $region4: #{tpu_custom_call.1} parent=1 // pred_region
      %s13 = ssub.s32 512, 512
      %14 = vsyncadd [#allocation4], %s13
      %s15 = sshll.u32 [#allocation3], 4
      %s16 = int_to_ptr.vmem [resolvable:$true] %s15
      %21 = dma.hbm_to_vmem [thread:$0]  %s0, 512, %s16, [#allocation4], 256, 256, 16
    $region5: #{tpu_custom_call.1} parent=1 // pred_fallthru
      _
    // Predicated region
    $region6: #{tpu_custom_call.1} parent=1 // pred_check
      _
    $region7: #{tpu_custom_call.1} parent=1 // pred_check_branch
      %23 = sbr.rel (0) target = $region9
    $region8: #{tpu_custom_call.1} parent=1 // pred_region
      %s25 = ssub.s32 256, 256
      %26 = vsyncadd [#allocation7], %s25
      %s27 = sshll.u32 [#allocation6], 4
      %s28 = int_to_ptr.vmem [resolvable:$true] %s27
      %33 = dma.hbm_to_vmem [thread:$0]  %s1, 256, %s28, [#allocation7], 128, 128, 8
    $region9: #{tpu_custom_call.1} parent=1 // pred_fallthru
      _
    // Predicated region
    $region10: #{tpu_custom_call.1} parent=1 // pred_check
      _
    $region11: #{tpu_custom_call.1} parent=1 // pred_check_branch
      %35 = sbr.rel (0) target = $region13
    $region12: #{tpu_custom_call.1} parent=1 // pred_region
      %36 = dma.done [#allocation4], 512
    $region13: #{tpu_custom_call.1} parent=1 // pred_fallthru
      _
    // Predicated region
    $region14: #{tpu_custom_call.1} parent=1 // pred_check
      _
    $region15: #{tpu_custom_call.1} parent=1 // pred_check_branch
      %38 = sbr.rel (0) target = $region17
    $region16: #{tpu_custom_call.1} parent=1 // pred_region
      %39 = dma.done [#allocation7], 256
    $region17: #{tpu_custom_call.1} parent=1 // pred_fallthru
      _
    %vm40 = vcmask 64512
    %41 = vst.msk [vmem:[#allocation2] sm:$0xff] %vm40, 0.0
    %42 = vst.msk [vmem:[#allocation2 + $0x20] sm:$0xff] %vm40, 0.0
    %43 = vst.msk [vmem:[#allocation2 + $0x18] sm:$0xff] %vm40, 0.0
    %44 = vst.msk [vmem:[#allocation2 + $0x38] sm:$0xff] %vm40, 0.0
    %v45 = vld [vmem:[#allocation6] sm:$0x1]
    %v46 = vld [vmem:[#allocation6 + $0x1] sm:$0x1]
    %v47 = vld [vmem:[#allocation6 + $0x2] sm:$0x1]
    %v48 = vld [vmem:[#allocation6 + $0x3] sm:$0x1]
    %v49 = vld [vmem:[#allocation6 + $0x4] sm:$0x1]
    %v50 = vld [vmem:[#allocation6 + $0x5] sm:$0x1]
    %v51 = vld [vmem:[#allocation6 + $0x6] sm:$0x1]
    %v52 = vld [vmem:[#allocation6 + $0x7] sm:$0x1]
    %v53 = vld [vmem:[#allocation6 + $0x8] sm:$0x1]
    %v54 = vld [vmem:[#allocation6 + $0x9] sm:$0x1]
    %v55 = vld [vmem:[#allocation3] sm:$0xff]
    %v56 = vld [vmem:[#allocation3 + $0x8] sm:$0xff]
    %57 = vxpose.xlu0.b32.start [1/16] %v55, 128
    %58 = vxpose.xlu0.b32.cont [2/16] 0.0, 128
    %59 = vxpose.xlu0.b32.cont [3/16] 0.0, 128
    %60 = vxpose.xlu0.b32.cont [4/16] 0.0, 128
    %61 = vxpose.xlu0.b32.cont [5/16] 0.0, 128
    %62 = vxpose.xlu0.b32.cont [6/16] 0.0, 128
    %63 = vxpose.xlu0.b32.cont [7/16] 0.0, 128
    %64 = vxpose.xlu0.b32.cont [8/16] 0.0, 128
    %65 = vxpose.xlu0.b32.cont [9/16] 0.0, 128
    %66 = vxpose.xlu0.b32.cont [10/16] 0.0, 128
    %67 = vxpose.xlu0.b32.cont [11/16] 0.0, 128
    %68 = vxpose.xlu0.b32.cont [12/16] 0.0, 128
    %69 = vxpose.xlu0.b32.cont [13/16] 0.0, 128
    %70 = vxpose.xlu0.b32.cont [14/16] 0.0, 128
    %71 = vxpose.xlu0.b32.cont [15/16] 0.0, 128
    %72 = vxpose.xlu0.b32.end [16/16] 0.0, 128
    %v73 = vpop.trf.xlu0
    %v74 = vpop.trf.xlu0
    %v75 = vpop.trf.xlu0
    %v76 = vpop.trf.xlu0
    %v77 = vpop.trf.xlu0
    %v78 = vpop.trf.xlu0
    %v79 = vpop.trf.xlu0
    %v80 = vpop.trf.xlu0
    %v81 = vpop.trf.xlu0
    %v82 = vpop.trf.xlu0
    %v83 = vpop.trf.xlu0
    %v84 = vpop.trf.xlu0
    %v85 = vpop.trf.xlu0
    %v86 = vpop.trf.xlu0
    %v87 = vpop.trf.xlu0
    %v88 = vpop.trf.xlu0
    %89 = vxpose.xlu0.b32.start [1/16] %v56, 128
    %90 = vxpose.xlu0.b32.cont [2/16] 0.0, 128
    %91 = vxpose.xlu0.b32.cont [3/16] 0.0, 128
    %92 = vxpose.xlu0.b32.cont [4/16] 0.0, 128
    %93 = vxpose.xlu0.b32.cont [5/16] 0.0, 128
    %94 = vxpose.xlu0.b32.cont [6/16] 0.0, 128
    %95 = vxpose.xlu0.b32.cont [7/16] 0.0, 128
    %96 = vxpose.xlu0.b32.cont [8/16] 0.0, 128
    %97 = vxpose.xlu0.b32.cont [9/16] 0.0, 128
    %98 = vxpose.xlu0.b32.cont [10/16] 0.0, 128
    %99 = vxpose.xlu0.b32.cont [11/16] 0.0, 128
    %100 = vxpose.xlu0.b32.cont [12/16] 0.0, 128
    %101 = vxpose.xlu0.b32.cont [13/16] 0.0, 128
    %102 = vxpose.xlu0.b32.cont [14/16] 0.0, 128
    %103 = vxpose.xlu0.b32.cont [15/16] 0.0, 128
    %104 = vxpose.xlu0.b32.end [16/16] 0.0, 128
    %v105 = vpop.trf.xlu0
    %v106 = vpop.trf.xlu0
    %v107 = vpop.trf.xlu0
    %v108 = vpop.trf.xlu0
    %v109 = vpop.trf.xlu0
    %v110 = vpop.trf.xlu0
    %v111 = vpop.trf.xlu0
    %v112 = vpop.trf.xlu0
    %v113 = vpop.trf.xlu0
    %v114 = vpop.trf.xlu0
    %v115 = vpop.trf.xlu0
    %v116 = vpop.trf.xlu0
    %v117 = vpop.trf.xlu0
    %v118 = vpop.trf.xlu0
    %v119 = vpop.trf.xlu0
    %v120 = vpop.trf.xlu0
    %v121 = vsel %vm40, %v73, 0.0
    %v122 = vsel %vm40, %v75, 0.0
    %v123 = vadd.f32 %v121, %v122
    %v124 = vsel %vm40, %v77, 0.0
    %v125 = vadd.f32 %v123, %v124
    %v126 = vsel %vm40, %v79, 0.0
    %v127 = vadd.f32 %v125, %v126
    %v128 = vsel %vm40, %v81, 0.0
    %v129 = vadd.f32 %v127, %v128
    %v130 = vsel %vm40, %v83, 0.0
    %v131 = vadd.f32 %v129, %v130
    %v132 = vsel %vm40, %v85, 0.0
    %v133 = vadd.f32 %v131, %v132
    %v134 = vsel %vm40, %v87, 0.0
    %v135 = vadd.f32 %v133, %v134
    %v136 = vsel %vm40, %v74, 0.0
    %v137 = vsel %vm40, %v76, 0.0
    %v138 = vadd.f32 %v136, %v137
    %v139 = vsel %vm40, %v78, 0.0
    %v140 = vadd.f32 %v138, %v139
    %v141 = vsel %vm40, %v80, 0.0
    %v142 = vadd.f32 %v140, %v141
    %v143 = vsel %vm40, %v82, 0.0
    %v144 = vadd.f32 %v142, %v143
    %v145 = vsel %vm40, %v84, 0.0
    %v146 = vadd.f32 %v144, %v145
    %v147 = vsel %vm40, %v86, 0.0
    %v148 = vadd.f32 %v146, %v147
    %v149 = vsel %vm40, %v88, 0.0
    %v150 = vadd.f32 %v148, %v149
    %v151 = vsel %vm40, %v105, 0.0
    %v152 = vsel %vm40, %v107, 0.0
    %v153 = vadd.f32 %v151, %v152
    %v154 = vsel %vm40, %v109, 0.0
    %v155 = vadd.f32 %v153, %v154
    %v156 = vsel %vm40, %v111, 0.0
    %v157 = vadd.f32 %v155, %v156
    %v158 = vsel %vm40, %v113, 0.0
    %v159 = vadd.f32 %v157, %v158
    %v160 = vsel %vm40, %v115, 0.0
    %v161 = vadd.f32 %v159, %v160
    %v162 = vsel %vm40, %v117, 0.0
    %v163 = vadd.f32 %v161, %v162
    %v164 = vsel %vm40, %v119, 0.0
    %v165 = vadd.f32 %v163, %v164
    %v166 = vsel %vm40, %v106, 0.0
    %v167 = vsel %vm40, %v108, 0.0
    %v168 = vadd.f32 %v166, %v167
    %v169 = vsel %vm40, %v110, 0.0
    %v170 = vadd.f32 %v168, %v169
    %v171 = vsel %vm40, %v112, 0.0
    %v172 = vadd.f32 %v170, %v171
    %v173 = vsel %vm40, %v114, 0.0
    %v174 = vadd.f32 %v172, %v173
    %v175 = vsel %vm40, %v116, 0.0
    %v176 = vadd.f32 %v174, %v175
    %v177 = vsel %vm40, %v118, 0.0
    %v178 = vadd.f32 %v176, %v177
    %v179 = vsel %vm40, %v120, 0.0
    %v180 = vadd.f32 %v178, %v179
    %181 = vst.msk [vmem:[#allocation2 + $0x8] sm:$0xff] %vm40, %v135
    %182 = vst.msk [vmem:[#allocation2 + $0x10] sm:$0xff] %vm40, %v150
    %183 = vst.msk [vmem:[#allocation2 + $0x28] sm:$0xff] %vm40, %v165
    %184 = vst.msk [vmem:[#allocation2 + $0x30] sm:$0xff] %vm40, %v180
    %v185 = vld [vmem:[#allocation2 + $0x7] sm:$0xff]
    %v186 = vld [vmem:[#allocation2 + $0xf] sm:$0xff]
    %v187 = vld [vmem:[#allocation2 + $0x27] sm:$0xff]
    %v188 = vld [vmem:[#allocation2 + $0x2f] sm:$0xff]
    %v189 = vlaneseq
    %v190 = vshrl.u32 %v189, 7
    %v191 = vsub.s32 0, %v190
    %v192 = vrot.slane %v51, %v191
    %v193 = vmul.f32 %v192, %v185
    %v194 = vmul.f32 %v192, %v186
    %v195 = vmul.f32 %v192, %v187
    %v196 = vmul.f32 %v192, %v188
    %v197 = vlaneseq
    %v198 = vshrl.u32 %v197, 7
    %v199 = vsub.s32 0, %v198
    %v200 = vrot.slane %v52, %v199
    %v201 = vmul.f32 %v200, %v135
    %v202 = vmul.f32 %v200, %v150
    %v203 = vmul.f32 %v200, %v165
    %v204 = vmul.f32 %v200, %v180
    %v205 = vadd.f32 %v193, %v201
    %v206 = vadd.f32 %v194, %v202
    %v207 = vadd.f32 %v195, %v203
    %v208 = vadd.f32 %v196, %v204
    %v209 = vld [vmem:[#allocation2 + $0x9] sm:$0xff]
    %v210 = vld [vmem:[#allocation2 + $0x11] sm:$0xff]
    %v211 = vld [vmem:[#allocation2 + $0x29] sm:$0xff]
    %v212 = vld [vmem:[#allocation2 + $0x31] sm:$0xff]
    %v213 = vlaneseq
    %v214 = vshrl.u32 %v213, 7
    %v215 = vsub.s32 0, %v214
    %v216 = vrot.slane %v53, %v215
    %v217 = vmul.f32 %v216, %v209
    %v218 = vmul.f32 %v216, %v210
    %v219 = vmul.f32 %v216, %v211
    %v220 = vmul.f32 %v216, %v212
    %v221 = vadd.f32 %v205, %v217
    %v222 = vadd.f32 %v206, %v218
    %v223 = vadd.f32 %v207, %v219
    %v224 = vadd.f32 %v208, %v220
    %v225 = vsel %vm40, %v221, 0.0
    %v226 = vrot.slane %v225, 4
    %v227 = vadd.f32 %v225, %v226
    %v228 = vrot.slane %v227, 2
    %v229 = vadd.f32 %v227, %v228
    %v230 = vrot.slane %v229, 1
    %v231 = vadd.f32 %v229, %v230
    %v232 = vsel %vm40, %v222, 0.0
    %v233 = vrot.slane %v232, 4
    %v234 = vadd.f32 %v232, %v233
    %v235 = vrot.slane %v234, 2
    %v236 = vadd.f32 %v234, %v235
    %v237 = vrot.slane %v236, 1
    %v238 = vadd.f32 %v236, %v237
    %v239 = vsel %vm40, %v223, 0.0
    %v240 = vrot.slane %v239, 4
    %v241 = vadd.f32 %v239, %v240
    %v242 = vrot.slane %v241, 2
    %v243 = vadd.f32 %v241, %v242
    %v244 = vrot.slane %v243, 1
    %v245 = vadd.f32 %v243, %v244
    %v246 = vsel %vm40, %v224, 0.0
    %v247 = vrot.slane %v246, 4
    %v248 = vadd.f32 %v246, %v247
    %v249 = vrot.slane %v248, 2
    %v250 = vadd.f32 %v248, %v249
    %v251 = vrot.slane %v250, 1
    %v252 = vadd.f32 %v250, %v251
    %253 = vst.msk [vmem:[#allocation2 + $0x8] sm:$0xff] %vm40, %v73
    %254 = vst.msk [vmem:[#allocation2 + $0x10] sm:$0xff] %vm40, %v74
    %255 = vst.msk [vmem:[#allocation2 + $0x28] sm:$0xff] %vm40, %v105
    %256 = vst.msk [vmem:[#allocation2 + $0x30] sm:$0xff] %vm40, %v106
    %v257 = vld [vmem:[#allocation2 + $0x7] sm:$0xff]
    %v258 = vld [vmem:[#allocation2 + $0xf] sm:$0xff]
    %v259 = vld [vmem:[#allocation2 + $0x27] sm:$0xff]
    %v260 = vld [vmem:[#allocation2 + $0x2f] sm:$0xff]
    %v261 = vlaneseq
    %v262 = vshrl.u32 %v261, 7
    %v263 = vsub.s32 0, %v262
    %v264 = vrot.slane %v48, %v263
    %v265 = vmul.f32 %v264, %v257
    %v266 = vmul.f32 %v264, %v258
    %v267 = vmul.f32 %v264, %v259
    %v268 = vmul.f32 %v264, %v260
    %v269 = vlaneseq
    %v270 = vshrl.u32 %v269, 7
    %v271 = vsub.s32 0, %v270
    %v272 = vrot.slane %v49, %v271
    %v273 = vmul.f32 %v272, %v73
    %v274 = vmul.f32 %v272, %v74
    %v275 = vmul.f32 %v272, %v105
    %v276 = vmul.f32 %v272, %v106
    %v277 = vadd.f32 %v265, %v273
    %v278 = vadd.f32 %v266, %v274
    %v279 = vadd.f32 %v267, %v275
    %v280 = vadd.f32 %v268, %v276
    %v281 = vld [vmem:[#allocation2 + $0x9] sm:$0xff]
    %v282 = vld [vmem:[#allocation2 + $0x11] sm:$0xff]
    %v283 = vld [vmem:[#allocation2 + $0x29] sm:$0xff]
    %v284 = vld [vmem:[#allocation2 + $0x31] sm:$0xff]
    %v285 = vlaneseq
    %v286 = vshrl.u32 %v285, 7
    %v287 = vsub.s32 0, %v286
    %v288 = vrot.slane %v50, %v287
    %v289 = vmul.f32 %v288, %v281
    %v290 = vmul.f32 %v288, %v282
    %v291 = vmul.f32 %v288, %v283
    %v292 = vmul.f32 %v288, %v284
    %v293 = vadd.f32 %v277, %v289
    %v294 = vadd.f32 %v278, %v290
    %v295 = vadd.f32 %v279, %v291
    %v296 = vadd.f32 %v280, %v292
    %v297 = vsel %vm40, %v293, 0.0
    %v298 = vrot.slane %v297, 4
    %v299 = vadd.f32 %v297, %v298
    %v300 = vrot.slane %v299, 2
    %v301 = vadd.f32 %v299, %v300
    %v302 = vrot.slane %v301, 1
    %v303 = vadd.f32 %v301, %v302
    %v304 = vsel %vm40, %v294, 0.0
    %v305 = vrot.slane %v304, 4
    %v306 = vadd.f32 %v304, %v305
    %v307 = vrot.slane %v306, 2
    %v308 = vadd.f32 %v306, %v307
    %v309 = vrot.slane %v308, 1
    %v310 = vadd.f32 %v308, %v309
    %v311 = vsel %vm40, %v295, 0.0
    %v312 = vrot.slane %v311, 4
    %v313 = vadd.f32 %v311, %v312
    %v314 = vrot.slane %v313, 2
    %v315 = vadd.f32 %v313, %v314
    %v316 = vrot.slane %v315, 1
    %v317 = vadd.f32 %v315, %v316
    %v318 = vsel %vm40, %v296, 0.0
    %v319 = vrot.slane %v318, 4
    %v320 = vadd.f32 %v318, %v319
    %v321 = vrot.slane %v320, 2
    %v322 = vadd.f32 %v320, %v321
    %v323 = vrot.slane %v322, 1
    %v324 = vadd.f32 %v322, %v323
    %325 = vst.msk [vmem:[#allocation2 + $0x8] sm:$0xff] %vm40, %v87
    %326 = vst.msk [vmem:[#allocation2 + $0x10] sm:$0xff] %vm40, %v88
    %327 = vst.msk [vmem:[#allocation2 + $0x28] sm:$0xff] %vm40, %v119
    %328 = vst.msk [vmem:[#allocation2 + $0x30] sm:$0xff] %vm40, %v120
    %v329 = vld [vmem:[#allocation2 + $0x7] sm:$0xff]
    %v330 = vld [vmem:[#allocation2 + $0xf] sm:$0xff]
    %v331 = vld [vmem:[#allocation2 + $0x27] sm:$0xff]
    %v332 = vld [vmem:[#allocation2 + $0x2f] sm:$0xff]
    %v333 = vlaneseq
    %v334 = vshrl.u32 %v333, 7
    %v335 = vsub.s32 0, %v334
    %v336 = vrot.slane %v45, %v335
    %v337 = vmul.f32 %v336, %v329
    %v338 = vmul.f32 %v336, %v330
    %v339 = vmul.f32 %v336, %v331
    %v340 = vmul.f32 %v336, %v332
    %v341 = vlaneseq
    %v342 = vshrl.u32 %v341, 7
    %v343 = vsub.s32 0, %v342
    %v344 = vrot.slane %v46, %v343
    %v345 = vmul.f32 %v344, %v87
    %v346 = vmul.f32 %v344, %v88
    %v347 = vmul.f32 %v344, %v119
    %v348 = vmul.f32 %v344, %v120
    %v349 = vadd.f32 %v337, %v345
    %v350 = vadd.f32 %v338, %v346
    %v351 = vadd.f32 %v339, %v347
    %v352 = vadd.f32 %v340, %v348
    %v353 = vld [vmem:[#allocation2 + $0x9] sm:$0xff]
    %v354 = vld [vmem:[#allocation2 + $0x11] sm:$0xff]
    %v355 = vld [vmem:[#allocation2 + $0x29] sm:$0xff]
    %v356 = vld [vmem:[#allocation2 + $0x31] sm:$0xff]
    %v357 = vlaneseq
    %v358 = vshrl.u32 %v357, 7
    %v359 = vsub.s32 0, %v358
    %v360 = vrot.slane %v47, %v359
    %v361 = vmul.f32 %v360, %v353
    %v362 = vmul.f32 %v360, %v354
    %v363 = vmul.f32 %v360, %v355
    %v364 = vmul.f32 %v360, %v356
    %v365 = vadd.f32 %v349, %v361
    %v366 = vadd.f32 %v350, %v362
    %v367 = vadd.f32 %v351, %v363
    %v368 = vadd.f32 %v352, %v364
    %v369 = vsel %vm40, %v365, 0.0
    %v370 = vrot.slane %v369, 4
    %v371 = vadd.f32 %v369, %v370
    %v372 = vrot.slane %v371, 2
    %v373 = vadd.f32 %v371, %v372
    %v374 = vrot.slane %v373, 1
    %v375 = vadd.f32 %v373, %v374
    %v376 = vsel %vm40, %v366, 0.0
    %v377 = vrot.slane %v376, 4
    %v378 = vadd.f32 %v376, %v377
    %v379 = vrot.slane %v378, 2
    %v380 = vadd.f32 %v378, %v379
    %v381 = vrot.slane %v380, 1
    %v382 = vadd.f32 %v380, %v381
    %v383 = vsel %vm40, %v367, 0.0
    %v384 = vrot.slane %v383, 4
    %v385 = vadd.f32 %v383, %v384
    %v386 = vrot.slane %v385, 2
    %v387 = vadd.f32 %v385, %v386
    %v388 = vrot.slane %v387, 1
    %v389 = vadd.f32 %v387, %v388
    %v390 = vsel %vm40, %v368, 0.0
    %v391 = vrot.slane %v390, 4
    %v392 = vadd.f32 %v390, %v391
    %v393 = vrot.slane %v392, 2
    %v394 = vadd.f32 %v392, %v393
    %v395 = vrot.slane %v394, 1
    %v396 = vadd.f32 %v394, %v395
    %v397 = vsub.f32 %v231, %v303
    %v398 = vsub.f32 %v238, %v310
    %v399 = vsub.f32 %v397, %v375
    %v400 = vsub.f32 %v398, %v382
    %v401 = vadd.f32 %v399, %v317
    %v402 = vadd.f32 %v400, %v324
    %v403 = vmul.f32 %v401, 0.015625
    %v404 = vmul.f32 %v402, 0.015625
    %v405 = vlaneseq
    %v406 = vshrl.u32 %v405, 7
    %v407 = vsub.s32 0, %v406
    %v408 = vrot.slane %v54, %v407
    %v409 = vadd.f32 %v403, %v408
    %v410 = vadd.f32 %v404, %v408
    %v413 = vrot.slane %v410, 7
    %vm414 = vcmask 1041409
    %v415 = vsel %vm414, %v413, %v409
    %vm417 = vcmask 58368
    %418 = vst.msk [vmem:[#allocation8] sm:$0x3] %vm417, %v415
    %v419 = vsub.f32 %v245, %v317
    %v420 = vsub.f32 %v252, %v324
    %v421 = vsub.f32 %v419, %v389
    %v422 = vsub.f32 %v420, %v396
    %v423 = vadd.f32 %v421, %v375
    %v424 = vadd.f32 %v422, %v382
    %v425 = vmul.f32 %v423, 0.015625
    %v426 = vmul.f32 %v424, 0.015625
    %v427 = vadd.f32 %v425, %v408
    %v428 = vadd.f32 %v426, %v408
    %v431 = vrot.slane %v428, 7
    %v432 = vsel %vm414, %v431, %v427
    %434 = vst.msk [vmem:[#allocation8 + $0x2] sm:$0x3] %vm417, %v432
    %s435 = scalar_lea.vmem [#allocation3], 16
    %v436 = vld [vmem:[%s435] sm:$0xff]
    %v437 = vld [vmem:[%s435 + $0x8] sm:$0xff]
    %438 = vxpose.xlu0.b32.start [1/16] %v436, 128
    %439 = vxpose.xlu0.b32.cont [2/16] 0.0, 128
    %440 = vxpose.xlu0.b32.cont [3/16] 0.0, 128
    %441 = vxpose.xlu0.b32.cont [4/16] 0.0, 128
    %442 = vxpose.xlu0.b32.cont [5/16] 0.0, 128
    %443 = vxpose.xlu0.b32.cont [6/16] 0.0, 128
    %444 = vxpose.xlu0.b32.cont [7/16] 0.0, 128
    %445 = vxpose.xlu0.b32.cont [8/16] 0.0, 128
    %446 = vxpose.xlu0.b32.cont [9/16] 0.0, 128
    %447 = vxpose.xlu0.b32.cont [10/16] 0.0, 128
    %448 = vxpose.xlu0.b32.cont [11/16] 0.0, 128
    %449 = vxpose.xlu0.b32.cont [12/16] 0.0, 128
    %450 = vxpose.xlu0.b32.cont [13/16] 0.0, 128
    %451 = vxpose.xlu0.b32.cont [14/16] 0.0, 128
    %452 = vxpose.xlu0.b32.cont [15/16] 0.0, 128
    %453 = vxpose.xlu0.b32.end [16/16] 0.0, 128
    %v454 = vpop.trf.xlu0
    %v455 = vpop.trf.xlu0
    %v456 = vpop.trf.xlu0
    %v457 = vpop.trf.xlu0
    %v458 = vpop.trf.xlu0
    %v459 = vpop.trf.xlu0
    %v460 = vpop.trf.xlu0
    %v461 = vpop.trf.xlu0
    %v462 = vpop.trf.xlu0
    %v463 = vpop.trf.xlu0
    %v464 = vpop.trf.xlu0
    %v465 = vpop.trf.xlu0
    %v466 = vpop.trf.xlu0
    %v467 = vpop.trf.xlu0
    %v468 = vpop.trf.xlu0
    %v469 = vpop.trf.xlu0
    %470 = vxpose.xlu0.b32.start [1/16] %v437, 128
    %471 = vxpose.xlu0.b32.cont [2/16] 0.0, 128
    %472 = vxpose.xlu0.b32.cont [3/16] 0.0, 128
    %473 = vxpose.xlu0.b32.cont [4/16] 0.0, 128
    %474 = vxpose.xlu0.b32.cont [5/16] 0.0, 128
    %475 = vxpose.xlu0.b32.cont [6/16] 0.0, 128
    %476 = vxpose.xlu0.b32.cont [7/16] 0.0, 128
    %477 = vxpose.xlu0.b32.cont [8/16] 0.0, 128
    %478 = vxpose.xlu0.b32.cont [9/16] 0.0, 128
    %479 = vxpose.xlu0.b32.cont [10/16] 0.0, 128
    %480 = vxpose.xlu0.b32.cont [11/16] 0.0, 128
    %481 = vxpose.xlu0.b32.cont [12/16] 0.0, 128
    %482 = vxpose.xlu0.b32.cont [13/16] 0.0, 128
    %483 = vxpose.xlu0.b32.cont [14/16] 0.0, 128
    %484 = vxpose.xlu0.b32.cont [15/16] 0.0, 128
    %485 = vxpose.xlu0.b32.end [16/16] 0.0, 128
    %v486 = vpop.trf.xlu0
    %v487 = vpop.trf.xlu0
    %v488 = vpop.trf.xlu0
    %v489 = vpop.trf.xlu0
    %v490 = vpop.trf.xlu0
    %v491 = vpop.trf.xlu0
    %v492 = vpop.trf.xlu0
    %v493 = vpop.trf.xlu0
    %v494 = vpop.trf.xlu0
    %v495 = vpop.trf.xlu0
    %v496 = vpop.trf.xlu0
    %v497 = vpop.trf.xlu0
    %v498 = vpop.trf.xlu0
    %v499 = vpop.trf.xlu0
    %v500 = vpop.trf.xlu0
    %v501 = vpop.trf.xlu0
    %v502 = vsel %vm40, %v454, 0.0
    %v503 = vsel %vm40, %v456, 0.0
    %v504 = vadd.f32 %v502, %v503
    %v505 = vsel %vm40, %v458, 0.0
    %v506 = vadd.f32 %v504, %v505
    %v507 = vsel %vm40, %v460, 0.0
    %v508 = vadd.f32 %v506, %v507
    %v509 = vsel %vm40, %v462, 0.0
    %v510 = vadd.f32 %v508, %v509
    %v511 = vsel %vm40, %v464, 0.0
    %v512 = vadd.f32 %v510, %v511
    %v513 = vsel %vm40, %v466, 0.0
    %v514 = vadd.f32 %v512, %v513
    %v515 = vsel %vm40, %v468, 0.0
    %v516 = vadd.f32 %v514, %v515
    %v517 = vsel %vm40, %v455, 0.0
    %v518 = vsel %vm40, %v457, 0.0
    %v519 = vadd.f32 %v517, %v518
    %v520 = vsel %vm40, %v459, 0.0
    %v521 = vadd.f32 %v519, %v520
    %v522 = vsel %vm40, %v461, 0.0
    %v523 = vadd.f32 %v521, %v522
    %v524 = vsel %vm40, %v463, 0.0
    %v525 = vadd.f32 %v523, %v524
    %v526 = vsel %vm40, %v465, 0.0
    %v527 = vadd.f32 %v525, %v526
    %v528 = vsel %vm40, %v467, 0.0
    %v529 = vadd.f32 %v527, %v528
    %v530 = vsel %vm40, %v469, 0.0
    %v531 = vadd.f32 %v529, %v530
    %v532 = vsel %vm40, %v486, 0.0
    %v533 = vsel %vm40, %v488, 0.0
    %v534 = vadd.f32 %v532, %v533
    %v535 = vsel %vm40, %v490, 0.0
    %v536 = vadd.f32 %v534, %v535
    %v537 = vsel %vm40, %v492, 0.0
    %v538 = vadd.f32 %v536, %v537
    %v539 = vsel %vm40, %v494, 0.0
    %v540 = vadd.f32 %v538, %v539
    %v541 = vsel %vm40, %v496, 0.0
    %v542 = vadd.f32 %v540, %v541
    %v543 = vsel %vm40, %v498, 0.0
    %v544 = vadd.f32 %v542, %v543
    %v545 = vsel %vm40, %v500, 0.0
    %v546 = vadd.f32 %v544, %v545
    %v547 = vsel %vm40, %v487, 0.0
    %v548 = vsel %vm40, %v489, 0.0
    %v549 = vadd.f32 %v547, %v548
    %v550 = vsel %vm40, %v491, 0.0
    %v551 = vadd.f32 %v549, %v550
    %v552 = vsel %vm40, %v493, 0.0
    %v553 = vadd.f32 %v551, %v552
    %v554 = vsel %vm40, %v495, 0.0
    %v555 = vadd.f32 %v553, %v554
    %v556 = vsel %vm40, %v497, 0.0
    %v557 = vadd.f32 %v555, %v556
    %v558 = vsel %vm40, %v499, 0.0
    %v559 = vadd.f32 %v557, %v558
    %v560 = vsel %vm40, %v501, 0.0
    %v561 = vadd.f32 %v559, %v560
    %562 = vst.msk [vmem:[#allocation2 + $0x8] sm:$0xff] %vm40, %v516
    %563 = vst.msk [vmem:[#allocation2 + $0x10] sm:$0xff] %vm40, %v531
    %564 = vst.msk [vmem:[#allocation2 + $0x28] sm:$0xff] %vm40, %v546
    %565 = vst.msk [vmem:[#allocation2 + $0x30] sm:$0xff] %vm40, %v561
    %v566 = vld [vmem:[#allocation2 + $0x7] sm:$0xff]
    %v567 = vld [vmem:[#allocation2 + $0xf] sm:$0xff]
    %v568 = vld [vmem:[#allocation2 + $0x27] sm:$0xff]
    %v569 = vld [vmem:[#allocation2 + $0x2f] sm:$0xff]
    %v570 = vmul.f32 %v192, %v566
    %v571 = vmul.f32 %v192, %v567
    %v572 = vmul.f32 %v192, %v568
    %v573 = vmul.f32 %v192, %v569
    %v574 = vmul.f32 %v200, %v516
    %v575 = vmul.f32 %v200, %v531
    %v576 = vmul.f32 %v200, %v546
    %v577 = vmul.f32 %v200, %v561
    %v578 = vadd.f32 %v570, %v574
    %v579 = vadd.f32 %v571, %v575
    %v580 = vadd.f32 %v572, %v576
    %v581 = vadd.f32 %v573, %v577
    %v582 = vld [vmem:[#allocation2 + $0x9] sm:$0xff]
    %v583 = vld [vmem:[#allocation2 + $0x11] sm:$0xff]
    %v584 = vld [vmem:[#allocation2 + $0x29] sm:$0xff]
    %v585 = vld [vmem:[#allocation2 + $0x31] sm:$0xff]
    %v586 = vmul.f32 %v216, %v582
    %v587 = vmul.f32 %v216, %v583
    %v588 = vmul.f32 %v216, %v584
    %v589 = vmul.f32 %v216, %v585
    %v590 = vadd.f32 %v578, %v586
    %v591 = vadd.f32 %v579, %v587
    %v592 = vadd.f32 %v580, %v588
    %v593 = vadd.f32 %v581, %v589
    %v594 = vsel %vm40, %v590, 0.0
    %v595 = vrot.slane %v594, 4
    %v596 = vadd.f32 %v594, %v595
    %v597 = vrot.slane %v596, 2
    %v598 = vadd.f32 %v596, %v597
    %v599 = vrot.slane %v598, 1
    %v600 = vadd.f32 %v598, %v599
    %v601 = vsel %vm40, %v591, 0.0
    %v602 = vrot.slane %v601, 4
    %v603 = vadd.f32 %v601, %v602
    %v604 = vrot.slane %v603, 2
    %v605 = vadd.f32 %v603, %v604
    %v606 = vrot.slane %v605, 1
    %v607 = vadd.f32 %v605, %v606
    %v608 = vsel %vm40, %v592, 0.0
    %v609 = vrot.slane %v608, 4
    %v610 = vadd.f32 %v608, %v609
    %v611 = vrot.slane %v610, 2
    %v612 = vadd.f32 %v610, %v611
    %v613 = vrot.slane %v612, 1
    %v614 = vadd.f32 %v612, %v613
    %v615 = vsel %vm40, %v593, 0.0
    %v616 = vrot.slane %v615, 4
    %v617 = vadd.f32 %v615, %v616
    %v618 = vrot.slane %v617, 2
    %v619 = vadd.f32 %v617, %v618
    %v620 = vrot.slane %v619, 1
    %v621 = vadd.f32 %v619, %v620
    %622 = vst.msk [vmem:[#allocation2 + $0x8] sm:$0xff] %vm40, %v454
    %623 = vst.msk [vmem:[#allocation2 + $0x10] sm:$0xff] %vm40, %v455
    %624 = vst.msk [vmem:[#allocation2 + $0x28] sm:$0xff] %vm40, %v486
    %625 = vst.msk [vmem:[#allocation2 + $0x30] sm:$0xff] %vm40, %v487
    %v626 = vld [vmem:[#allocation2 + $0x7] sm:$0xff]
    %v627 = vld [vmem:[#allocation2 + $0xf] sm:$0xff]
    %v628 = vld [vmem:[#allocation2 + $0x27] sm:$0xff]
    %v629 = vld [vmem:[#allocation2 + $0x2f] sm:$0xff]
    %v630 = vmul.f32 %v264, %v626
    %v631 = vmul.f32 %v264, %v627
    %v632 = vmul.f32 %v264, %v628
    %v633 = vmul.f32 %v264, %v629
    %v634 = vmul.f32 %v272, %v454
    %v635 = vmul.f32 %v272, %v455
    %v636 = vmul.f32 %v272, %v486
    %v637 = vmul.f32 %v272, %v487
    %v638 = vadd.f32 %v630, %v634
    %v639 = vadd.f32 %v631, %v635
    %v640 = vadd.f32 %v632, %v636
    %v641 = vadd.f32 %v633, %v637
    %v642 = vld [vmem:[#allocation2 + $0x9] sm:$0xff]
    %v643 = vld [vmem:[#allocation2 + $0x11] sm:$0xff]
    %v644 = vld [vmem:[#allocation2 + $0x29] sm:$0xff]
    %v645 = vld [vmem:[#allocation2 + $0x31] sm:$0xff]
    %v646 = vmul.f32 %v288, %v642
    %v647 = vmul.f32 %v288, %v643
    %v648 = vmul.f32 %v288, %v644
    %v649 = vmul.f32 %v288, %v645
    %v650 = vadd.f32 %v638, %v646
    %v651 = vadd.f32 %v639, %v647
    %v652 = vadd.f32 %v640, %v648
    %v653 = vadd.f32 %v641, %v649
    %v654 = vsel %vm40, %v650, 0.0
    %v655 = vrot.slane %v654, 4
    %v656 = vadd.f32 %v654, %v655
    %v657 = vrot.slane %v656, 2
    %v658 = vadd.f32 %v656, %v657
    %v659 = vrot.slane %v658, 1
    %v660 = vadd.f32 %v658, %v659
    %v661 = vsel %vm40, %v651, 0.0
    %v662 = vrot.slane %v661, 4
    %v663 = vadd.f32 %v661, %v662
    %v664 = vrot.slane %v663, 2
    %v665 = vadd.f32 %v663, %v664
    %v666 = vrot.slane %v665, 1
    %v667 = vadd.f32 %v665, %v666
    %v668 = vsel %vm40, %v652, 0.0
    %v669 = vrot.slane %v668, 4
    %v670 = vadd.f32 %v668, %v669
    %v671 = vrot.slane %v670, 2
    %v672 = vadd.f32 %v670, %v671
    %v673 = vrot.slane %v672, 1
    %v674 = vadd.f32 %v672, %v673
    %v675 = vsel %vm40, %v653, 0.0
    %v676 = vrot.slane %v675, 4
    %v677 = vadd.f32 %v675, %v676
    %v678 = vrot.slane %v677, 2
    %v679 = vadd.f32 %v677, %v678
    %v680 = vrot.slane %v679, 1
    %v681 = vadd.f32 %v679, %v680
    %682 = vst.msk [vmem:[#allocation2 + $0x8] sm:$0xff] %vm40, %v468
    %683 = vst.msk [vmem:[#allocation2 + $0x10] sm:$0xff] %vm40, %v469
    %684 = vst.msk [vmem:[#allocation2 + $0x28] sm:$0xff] %vm40, %v500
    %685 = vst.msk [vmem:[#allocation2 + $0x30] sm:$0xff] %vm40, %v501
    %v686 = vld [vmem:[#allocation2 + $0x7] sm:$0xff]
    %v687 = vld [vmem:[#allocation2 + $0xf] sm:$0xff]
    %v688 = vld [vmem:[#allocation2 + $0x27] sm:$0xff]
    %v689 = vld [vmem:[#allocation2 + $0x2f] sm:$0xff]
    %v690 = vmul.f32 %v336, %v686
    %v691 = vmul.f32 %v336, %v687
    %v692 = vmul.f32 %v336, %v688
    %v693 = vmul.f32 %v336, %v689
    %v694 = vmul.f32 %v344, %v468
    %v695 = vmul.f32 %v344, %v469
    %v696 = vmul.f32 %v344, %v500
    %v697 = vmul.f32 %v344, %v501
    %v698 = vadd.f32 %v690, %v694
    %v699 = vadd.f32 %v691, %v695
    %v700 = vadd.f32 %v692, %v696
    %v701 = vadd.f32 %v693, %v697
    %v702 = vld [vmem:[#allocation2 + $0x9] sm:$0xff]
    %v703 = vld [vmem:[#allocation2 + $0x11] sm:$0xff]
    %v704 = vld [vmem:[#allocation2 + $0x29] sm:$0xff]
    %v705 = vld [vmem:[#allocation2 + $0x31] sm:$0xff]
    %v706 = vmul.f32 %v360, %v702
    %v707 = vmul.f32 %v360, %v703
    %v708 = vmul.f32 %v360, %v704
    %v709 = vmul.f32 %v360, %v705
    %v710 = vadd.f32 %v698, %v706
    %v711 = vadd.f32 %v699, %v707
    %v712 = vadd.f32 %v700, %v708
    %v713 = vadd.f32 %v701, %v709
    %v714 = vsel %vm40, %v710, 0.0
    %v715 = vrot.slane %v714, 4
    %v716 = vadd.f32 %v714, %v715
    %v717 = vrot.slane %v716, 2
    %v718 = vadd.f32 %v716, %v717
    %v719 = vrot.slane %v718, 1
    %v720 = vadd.f32 %v718, %v719
    %v721 = vsel %vm40, %v711, 0.0
    %v722 = vrot.slane %v721, 4
    %v723 = vadd.f32 %v721, %v722
    %v724 = vrot.slane %v723, 2
    %v725 = vadd.f32 %v723, %v724
    %v726 = vrot.slane %v725, 1
    %v727 = vadd.f32 %v725, %v726
    %v728 = vsel %vm40, %v712, 0.0
    %v729 = vrot.slane %v728, 4
    %v730 = vadd.f32 %v728, %v729
    %v731 = vrot.slane %v730, 2
    %v732 = vadd.f32 %v730, %v731
    %v733 = vrot.slane %v732, 1
    %v734 = vadd.f32 %v732, %v733
    %v735 = vsel %vm40, %v713, 0.0
    %v736 = vrot.slane %v735, 4
    %v737 = vadd.f32 %v735, %v736
    %v738 = vrot.slane %v737, 2
    %v739 = vadd.f32 %v737, %v738
    %v740 = vrot.slane %v739, 1
    %v741 = vadd.f32 %v739, %v740
    %v742 = vsub.f32 %v600, %v660
    %v743 = vsub.f32 %v607, %v667
    %v744 = vsub.f32 %v742, %v720
    %v745 = vsub.f32 %v743, %v727
    %v746 = vadd.f32 %v744, %v674
    %v747 = vadd.f32 %v745, %v681
    %v748 = vmul.f32 %v746, 0.015625
    %v749 = vmul.f32 %v747, 0.015625
    %v750 = vadd.f32 %v748, %v408
    %v751 = vadd.f32 %v749, %v408
    %v754 = vrot.slane %v751, 7
    %v755 = vsel %vm414, %v754, %v750
    %s757 = scalar_lea.vmem [#allocation8], 4
    %758 = vst.msk [vmem:[%s757] sm:$0x3] %vm417, %v755
    %v759 = vsub.f32 %v614, %v674
    %v760 = vsub.f32 %v621, %v681
    %v761 = vsub.f32 %v759, %v734
    %v762 = vsub.f32 %v760, %v741
    %v763 = vadd.f32 %v761, %v720
    %v764 = vadd.f32 %v762, %v727
    %v765 = vmul.f32 %v763, 0.015625
    %v766 = vmul.f32 %v764, 0.015625
    %v767 = vadd.f32 %v765, %v408
    %v768 = vadd.f32 %v766, %v408
    %v771 = vrot.slane %v768, 7
    %v772 = vsel %vm414, %v771, %v767
    %774 = vst.msk [vmem:[%s757 + $0x2] sm:$0x3] %vm417, %v772
    // Predicated region
    $region18: #{tpu_custom_call.1} parent=1 // pred_check
      _
    $region19: #{tpu_custom_call.1} parent=1 // pred_check_branch
      %776 = sbr.rel (0) target = $region21
    $region20: #{tpu_custom_call.1} parent=1 // pred_region
      %s778 = ssub.s32 128, 128
      %779 = vsyncadd [#allocation5], %s778
      %s780 = sshll.u32 [#allocation8], 4
      %s781 = int_to_ptr.vmem [resolvable:$true] %s780
      %786 = dma.vmem_to_hbm [thread:$0]  %s781, 128, %s2, [#allocation5], 64, 64, 4
    $region21: #{tpu_custom_call.1} parent=1 // pred_fallthru
      _
    // Predicated region
    $region22: #{tpu_custom_call.1} parent=1 // pred_check
      _
    $region23: #{tpu_custom_call.1} parent=1 // pred_check_branch
      %788 = sbr.rel (0) target = $region25
    $region24: #{tpu_custom_call.1} parent=1 // pred_region
      %789 = dma.done [#allocation5], 128
    $region25: #{tpu_custom_call.1} parent=1 // pred_fallthru
      _
    %790 = vsyncpa [#allocation4], 1
    %791 = vsyncpa [#allocation7], 1
    %792 = vsyncpa [#allocation5], 1

// kernel: tpu_custom_call.1
$region0: #{tpu_custom_call.1}
  #allocation0 [shape = 'u32[]', space=smem, size = 0x4, offset = 0x4, fixed_abs, tag = 'smem constant byte address 0x4 - core index']
  #allocation1 [shape = 'u32[144,128]{1,0:T(1,128)}', space=vmem, size = 0x12000, scoped, tag = 'internal scratch']
  #allocation2 [shape = 'f32[2,32,8]{2,1,0:T(8,128)}', space=vmem, size = 0x8000, scoped, tag = 'scratch operand']
  %s0 = inlined_call_operand.hbm [shape: f32[2,16,16,8], index: 0, kind: input, shape index: {}]
  %s1 = inlined_call_operand.hbm [shape: f32[10,8], index: 1, kind: input, shape index: {}]
  %s2 = inlined_call_operand.hbm [shape: f32[2,4,8], index: 2, kind: output, shape index: {}]
  %s3 = sld [smem:[#allocation0]]
  $region26: #{tpu_custom_call.1} parent=0
    _
  %s5 = ssub.s32 1, %s3
  %s6 = scalar_select 0, %s5, %s3
  $region1: #{tpu_custom_call.1} parent=0
    #allocation3 [shape = 'u8[262144]{0}', space=vmem, size = 0x40000, scoped, tag = 'input window, operand 0, single buffered']
    #allocation4 [shape = 's32[1]{0}', space=sflag, size = 0x4, scoped, tag = 'scoped memory for tpu_custom_call.1']
    #allocation5 [shape = 's32[1]{0}', space=sflag, size = 0x4, scoped, tag = 'scoped memory for tpu_custom_call.1']
    #allocation6 [shape = 'u8[8192]{0}', space=vmem, size = 0x2000, scoped, tag = 'input window, operand 1, single buffered']
    #allocation7 [shape = 's32[1]{0}', space=sflag, size = 0x4, scoped, tag = 'scoped memory for tpu_custom_call.1']
    #allocation8 [shape = 'u8[4096]{0}', space=vmem, size = 0x1000, scoped, tag = 'output window, operand 0, single buffered']
    %7 = vsyncpa [#allocation4], 0
    %8 = vsyncpa [#allocation7], 0
    %9 = vsyncpa [#allocation5], 0
    // Predicated region
    $region2: #{tpu_custom_call.1} parent=1 // pred_check
      _
    $region3: #{tpu_custom_call.1} parent=1 // pred_check_branch
      %11 = sbr.rel (0) target = $region5
    $region4: #{tpu_custom_call.1} parent=1 // pred_region
      %s13 = ssub.s32 8192, 8192
      %14 = vsyncadd [#allocation4], %s13
      %s15 = sshll.u32 [#allocation3], 4
      %s16 = int_to_ptr.vmem [resolvable:$true] %s15
      %21 = dma.hbm_to_vmem [thread:$0]  %s0, 8192, %s16, [#allocation4], 128, 128, 8
    $region5: #{tpu_custom_call.1} parent=1 // pred_fallthru
      _
    // Predicated region
    $region6: #{tpu_custom_call.1} parent=1 // pred_check
      _
    $region7: #{tpu_custom_call.1} parent=1 // pred_check_branch
      %23 = sbr.rel (0) target = $region9
    $region8: #{tpu_custom_call.1} parent=1 // pred_region
      %s25 = ssub.s32 256, 256
      %26 = vsyncadd [#allocation7], %s25
      %s27 = sshll.u32 [#allocation6], 4
      %s28 = int_to_ptr.vmem [resolvable:$true] %s27
      %33 = dma.hbm_to_vmem [thread:$0]  %s1, 256, %s28, [#allocation7], 128, 128, 8
    $region9: #{tpu_custom_call.1} parent=1 // pred_fallthru
      _
    // Predicated region
    $region10: #{tpu_custom_call.1} parent=1 // pred_check
      _
    $region11: #{tpu_custom_call.1} parent=1 // pred_check_branch
      %35 = sbr.rel (0) target = $region13
    $region12: #{tpu_custom_call.1} parent=1 // pred_region
      %36 = dma.done [#allocation4], 8192
    $region13: #{tpu_custom_call.1} parent=1 // pred_fallthru
      _
    // Predicated region
    $region14: #{tpu_custom_call.1} parent=1 // pred_check
      _
    $region15: #{tpu_custom_call.1} parent=1 // pred_check_branch
      %38 = sbr.rel (0) target = $region17
    $region16: #{tpu_custom_call.1} parent=1 // pred_region
      %39 = dma.done [#allocation7], 256
    $region17: #{tpu_custom_call.1} parent=1 // pred_fallthru
      _
    %vm40 = vcmask 64512
    %41 = vst.msk [vmem:[#allocation2] sm:$0xff] %vm40, 0.0
    %42 = vst.msk [vmem:[#allocation2 + $0x20] sm:$0xff] %vm40, 0.0
    %43 = vst.msk [vmem:[#allocation2 + $0x18] sm:$0xff] %vm40, 0.0
    %44 = vst.msk [vmem:[#allocation2 + $0x38] sm:$0xff] %vm40, 0.0
    %v45 = vld [vmem:[#allocation6] sm:$0x1]
    %v46 = vld [vmem:[#allocation6 + $0x1] sm:$0x1]
    %v47 = vld [vmem:[#allocation6 + $0x2] sm:$0x1]
    %v48 = vld [vmem:[#allocation6 + $0x3] sm:$0x1]
    %v49 = vld [vmem:[#allocation6 + $0x4] sm:$0x1]
    %v50 = vld [vmem:[#allocation6 + $0x5] sm:$0x1]
    %v51 = vld [vmem:[#allocation6 + $0x6] sm:$0x1]
    %v52 = vld [vmem:[#allocation6 + $0x7] sm:$0x1]
    %v53 = vld [vmem:[#allocation6 + $0x8] sm:$0x1]
    %v54 = vld [vmem:[#allocation6 + $0x9] sm:$0x1]
    %v55 = vld [vmem:[#allocation3] sm:$0xff]
    %v56 = vld [vmem:[#allocation3 + $0x8] sm:$0xff]
    %v57 = vld [vmem:[#allocation3 + $0x10] sm:$0xff]
    %v58 = vld [vmem:[#allocation3 + $0x18] sm:$0xff]
    %v59 = vld [vmem:[#allocation3 + $0x20] sm:$0xff]
    %v60 = vld [vmem:[#allocation3 + $0x28] sm:$0xff]
    %v61 = vld [vmem:[#allocation3 + $0x30] sm:$0xff]
    %v62 = vld [vmem:[#allocation3 + $0x38] sm:$0xff]
    %v63 = vld [vmem:[#allocation3 + $0x40] sm:$0xff]
    %v64 = vld [vmem:[#allocation3 + $0x48] sm:$0xff]
    %v65 = vld [vmem:[#allocation3 + $0x50] sm:$0xff]
    %v66 = vld [vmem:[#allocation3 + $0x58] sm:$0xff]
    %v67 = vld [vmem:[#allocation3 + $0x60] sm:$0xff]
    %v68 = vld [vmem:[#allocation3 + $0x68] sm:$0xff]
    %v69 = vld [vmem:[#allocation3 + $0x70] sm:$0xff]
    %v70 = vld [vmem:[#allocation3 + $0x78] sm:$0xff]
    %v71 = vld [vmem:[#allocation3 + $0x80] sm:$0xff]
    %v72 = vld [vmem:[#allocation3 + $0x88] sm:$0xff]
    %v73 = vld [vmem:[#allocation3 + $0x90] sm:$0xff]
    %v74 = vld [vmem:[#allocation3 + $0x98] sm:$0xff]
    %v75 = vld [vmem:[#allocation3 + $0xa0] sm:$0xff]
    %v76 = vld [vmem:[#allocation3 + $0xa8] sm:$0xff]
    %v77 = vld [vmem:[#allocation3 + $0xb0] sm:$0xff]
    %v78 = vld [vmem:[#allocation3 + $0xb8] sm:$0xff]
    %v79 = vld [vmem:[#allocation3 + $0xc0] sm:$0xff]
    %v80 = vld [vmem:[#allocation3 + $0xc8] sm:$0xff]
    %v81 = vld [vmem:[#allocation3 + $0xd0] sm:$0xff]
    %v82 = vld [vmem:[#allocation3 + $0xd8] sm:$0xff]
    %v83 = vld [vmem:[#allocation3 + $0xe0] sm:$0xff]
    %v84 = vld [vmem:[#allocation3 + $0xe8] sm:$0xff]
    %v85 = vld [vmem:[#allocation3 + $0xf0] sm:$0xff]
    %v86 = vld [vmem:[#allocation3 + $0xf8] sm:$0xff]
    %v87 = vsel %vm40, %v55, 0.0
    %v88 = vsel %vm40, %v57, 0.0
    %v89 = vadd.f32 %v87, %v88
    %v90 = vsel %vm40, %v59, 0.0
    %v91 = vadd.f32 %v89, %v90
    %v92 = vsel %vm40, %v61, 0.0
    %v93 = vadd.f32 %v91, %v92
    %v94 = vsel %vm40, %v63, 0.0
    %v95 = vadd.f32 %v93, %v94
    %v96 = vsel %vm40, %v65, 0.0
    %v97 = vadd.f32 %v95, %v96
    %v98 = vsel %vm40, %v67, 0.0
    %v99 = vadd.f32 %v97, %v98
    %v100 = vsel %vm40, %v69, 0.0
    %v101 = vadd.f32 %v99, %v100
    %v102 = vsel %vm40, %v56, 0.0
    %v103 = vsel %vm40, %v58, 0.0
    %v104 = vadd.f32 %v102, %v103
    %v105 = vsel %vm40, %v60, 0.0
    %v106 = vadd.f32 %v104, %v105
    %v107 = vsel %vm40, %v62, 0.0
    %v108 = vadd.f32 %v106, %v107
    %v109 = vsel %vm40, %v64, 0.0
    %v110 = vadd.f32 %v108, %v109
    %v111 = vsel %vm40, %v66, 0.0
    %v112 = vadd.f32 %v110, %v111
    %v113 = vsel %vm40, %v68, 0.0
    %v114 = vadd.f32 %v112, %v113
    %v115 = vsel %vm40, %v70, 0.0
    %v116 = vadd.f32 %v114, %v115
    %v117 = vsel %vm40, %v71, 0.0
    %v118 = vsel %vm40, %v73, 0.0
    %v119 = vadd.f32 %v117, %v118
    %v120 = vsel %vm40, %v75, 0.0
    %v121 = vadd.f32 %v119, %v120
    %v122 = vsel %vm40, %v77, 0.0
    %v123 = vadd.f32 %v121, %v122
    %v124 = vsel %vm40, %v79, 0.0
    %v125 = vadd.f32 %v123, %v124
    %v126 = vsel %vm40, %v81, 0.0
    %v127 = vadd.f32 %v125, %v126
    %v128 = vsel %vm40, %v83, 0.0
    %v129 = vadd.f32 %v127, %v128
    %v130 = vsel %vm40, %v85, 0.0
    %v131 = vadd.f32 %v129, %v130
    %v132 = vsel %vm40, %v72, 0.0
    %v133 = vsel %vm40, %v74, 0.0
    %v134 = vadd.f32 %v132, %v133
    %v135 = vsel %vm40, %v76, 0.0
    %v136 = vadd.f32 %v134, %v135
    %v137 = vsel %vm40, %v78, 0.0
    %v138 = vadd.f32 %v136, %v137
    %v139 = vsel %vm40, %v80, 0.0
    %v140 = vadd.f32 %v138, %v139
    %v141 = vsel %vm40, %v82, 0.0
    %v142 = vadd.f32 %v140, %v141
    %v143 = vsel %vm40, %v84, 0.0
    %v144 = vadd.f32 %v142, %v143
    %v145 = vsel %vm40, %v86, 0.0
    %v146 = vadd.f32 %v144, %v145
    %147 = vst.msk [vmem:[#allocation2 + $0x8] sm:$0xff] %vm40, %v101
    %148 = vst.msk [vmem:[#allocation2 + $0x10] sm:$0xff] %vm40, %v116
    %149 = vst.msk [vmem:[#allocation2 + $0x28] sm:$0xff] %vm40, %v131
    %150 = vst.msk [vmem:[#allocation2 + $0x30] sm:$0xff] %vm40, %v146
    %v151 = vld [vmem:[#allocation2 + $0x7] sm:$0xff]
    %v152 = vld [vmem:[#allocation2 + $0xf] sm:$0xff]
    %v153 = vld [vmem:[#allocation2 + $0x27] sm:$0xff]
    %v154 = vld [vmem:[#allocation2 + $0x2f] sm:$0xff]
    %v155 = vlaneseq
    %v156 = vshrl.u32 %v155, 7
    %v157 = vsub.s32 0, %v156
    %v158 = vrot.slane %v51, %v157
    %v159 = vmul.f32 %v158, %v151
    %v160 = vmul.f32 %v158, %v152
    %v161 = vmul.f32 %v158, %v153
    %v162 = vmul.f32 %v158, %v154
    %v163 = vlaneseq
    %v164 = vshrl.u32 %v163, 7
    %v165 = vsub.s32 0, %v164
    %v166 = vrot.slane %v52, %v165
    %v167 = vmul.f32 %v166, %v101
    %v168 = vmul.f32 %v166, %v116
    %v169 = vmul.f32 %v166, %v131
    %v170 = vmul.f32 %v166, %v146
    %v171 = vadd.f32 %v159, %v167
    %v172 = vadd.f32 %v160, %v168
    %v173 = vadd.f32 %v161, %v169
    %v174 = vadd.f32 %v162, %v170
    %v175 = vld [vmem:[#allocation2 + $0x9] sm:$0xff]
    %v176 = vld [vmem:[#allocation2 + $0x11] sm:$0xff]
    %v177 = vld [vmem:[#allocation2 + $0x29] sm:$0xff]
    %v178 = vld [vmem:[#allocation2 + $0x31] sm:$0xff]
    %v179 = vlaneseq
    %v180 = vshrl.u32 %v179, 7
    %v181 = vsub.s32 0, %v180
    %v182 = vrot.slane %v53, %v181
    %v183 = vmul.f32 %v182, %v175
    %v184 = vmul.f32 %v182, %v176
    %v185 = vmul.f32 %v182, %v177
    %v186 = vmul.f32 %v182, %v178
    %v187 = vadd.f32 %v171, %v183
    %v188 = vadd.f32 %v172, %v184
    %v189 = vadd.f32 %v173, %v185
    %v190 = vadd.f32 %v174, %v186
    %v191 = vsel %vm40, %v187, 0.0
    %v192 = vrot.slane %v191, 4
    %v193 = vadd.f32 %v191, %v192
    %v194 = vrot.slane %v193, 2
    %v195 = vadd.f32 %v193, %v194
    %v196 = vrot.slane %v195, 1
    %v197 = vadd.f32 %v195, %v196
    %v198 = vsel %vm40, %v188, 0.0
    %v199 = vrot.slane %v198, 4
    %v200 = vadd.f32 %v198, %v199
    %v201 = vrot.slane %v200, 2
    %v202 = vadd.f32 %v200, %v201
    %v203 = vrot.slane %v202, 1
    %v204 = vadd.f32 %v202, %v203
    %v205 = vsel %vm40, %v189, 0.0
    %v206 = vrot.slane %v205, 4
    %v207 = vadd.f32 %v205, %v206
    %v208 = vrot.slane %v207, 2
    %v209 = vadd.f32 %v207, %v208
    %v210 = vrot.slane %v209, 1
    %v211 = vadd.f32 %v209, %v210
    %v212 = vsel %vm40, %v190, 0.0
    %v213 = vrot.slane %v212, 4
    %v214 = vadd.f32 %v212, %v213
    %v215 = vrot.slane %v214, 2
    %v216 = vadd.f32 %v214, %v215
    %v217 = vrot.slane %v216, 1
    %v218 = vadd.f32 %v216, %v217
    %219 = vst.msk [vmem:[#allocation2 + $0x8] sm:$0xff] %vm40, %v55
    %220 = vst.msk [vmem:[#allocation2 + $0x10] sm:$0xff] %vm40, %v56
    %221 = vst.msk [vmem:[#allocation2 + $0x28] sm:$0xff] %vm40, %v71
    %222 = vst.msk [vmem:[#allocation2 + $0x30] sm:$0xff] %vm40, %v72
    %v223 = vld [vmem:[#allocation2 + $0x7] sm:$0xff]
    %v224 = vld [vmem:[#allocation2 + $0xf] sm:$0xff]
    %v225 = vld [vmem:[#allocation2 + $0x27] sm:$0xff]
    %v226 = vld [vmem:[#allocation2 + $0x2f] sm:$0xff]
    %v227 = vlaneseq
    %v228 = vshrl.u32 %v227, 7
    %v229 = vsub.s32 0, %v228
    %v230 = vrot.slane %v48, %v229
    %v231 = vmul.f32 %v230, %v223
    %v232 = vmul.f32 %v230, %v224
    %v233 = vmul.f32 %v230, %v225
    %v234 = vmul.f32 %v230, %v226
    %v235 = vlaneseq
    %v236 = vshrl.u32 %v235, 7
    %v237 = vsub.s32 0, %v236
    %v238 = vrot.slane %v49, %v237
    %v239 = vmul.f32 %v238, %v55
    %v240 = vmul.f32 %v238, %v56
    %v241 = vmul.f32 %v238, %v71
    %v242 = vmul.f32 %v238, %v72
    %v243 = vadd.f32 %v231, %v239
    %v244 = vadd.f32 %v232, %v240
    %v245 = vadd.f32 %v233, %v241
    %v246 = vadd.f32 %v234, %v242
    %v247 = vld [vmem:[#allocation2 + $0x9] sm:$0xff]
    %v248 = vld [vmem:[#allocation2 + $0x11] sm:$0xff]
    %v249 = vld [vmem:[#allocation2 + $0x29] sm:$0xff]
    %v250 = vld [vmem:[#allocation2 + $0x31] sm:$0xff]
    %v251 = vlaneseq
    %v252 = vshrl.u32 %v251, 7
    %v253 = vsub.s32 0, %v252
    %v254 = vrot.slane %v50, %v253
    %v255 = vmul.f32 %v254, %v247
    %v256 = vmul.f32 %v254, %v248
    %v257 = vmul.f32 %v254, %v249
    %v258 = vmul.f32 %v254, %v250
    %v259 = vadd.f32 %v243, %v255
    %v260 = vadd.f32 %v244, %v256
    %v261 = vadd.f32 %v245, %v257
    %v262 = vadd.f32 %v246, %v258
    %v263 = vsel %vm40, %v259, 0.0
    %v264 = vrot.slane %v263, 4
    %v265 = vadd.f32 %v263, %v264
    %v266 = vrot.slane %v265, 2
    %v267 = vadd.f32 %v265, %v266
    %v268 = vrot.slane %v267, 1
    %v269 = vadd.f32 %v267, %v268
    %v270 = vsel %vm40, %v260, 0.0
    %v271 = vrot.slane %v270, 4
    %v272 = vadd.f32 %v270, %v271
    %v273 = vrot.slane %v272, 2
    %v274 = vadd.f32 %v272, %v273
    %v275 = vrot.slane %v274, 1
    %v276 = vadd.f32 %v274, %v275
    %v277 = vsel %vm40, %v261, 0.0
    %v278 = vrot.slane %v277, 4
    %v279 = vadd.f32 %v277, %v278
    %v280 = vrot.slane %v279, 2
    %v281 = vadd.f32 %v279, %v280
    %v282 = vrot.slane %v281, 1
    %v283 = vadd.f32 %v281, %v282
    %v284 = vsel %vm40, %v262, 0.0
    %v285 = vrot.slane %v284, 4
    %v286 = vadd.f32 %v284, %v285
    %v287 = vrot.slane %v286, 2
    %v288 = vadd.f32 %v286, %v287
    %v289 = vrot.slane %v288, 1
    %v290 = vadd.f32 %v288, %v289
    %291 = vst.msk [vmem:[#allocation2 + $0x8] sm:$0xff] %vm40, %v69
    %292 = vst.msk [vmem:[#allocation2 + $0x10] sm:$0xff] %vm40, %v70
    %293 = vst.msk [vmem:[#allocation2 + $0x28] sm:$0xff] %vm40, %v85
    %294 = vst.msk [vmem:[#allocation2 + $0x30] sm:$0xff] %vm40, %v86
    %v295 = vld [vmem:[#allocation2 + $0x7] sm:$0xff]
    %v296 = vld [vmem:[#allocation2 + $0xf] sm:$0xff]
    %v297 = vld [vmem:[#allocation2 + $0x27] sm:$0xff]
    %v298 = vld [vmem:[#allocation2 + $0x2f] sm:$0xff]
    %v299 = vlaneseq
    %v300 = vshrl.u32 %v299, 7
    %v301 = vsub.s32 0, %v300
    %v302 = vrot.slane %v45, %v301
    %v303 = vmul.f32 %v302, %v295
    %v304 = vmul.f32 %v302, %v296
    %v305 = vmul.f32 %v302, %v297
    %v306 = vmul.f32 %v302, %v298
    %v307 = vlaneseq
    %v308 = vshrl.u32 %v307, 7
    %v309 = vsub.s32 0, %v308
    %v310 = vrot.slane %v46, %v309
    %v311 = vmul.f32 %v310, %v69
    %v312 = vmul.f32 %v310, %v70
    %v313 = vmul.f32 %v310, %v85
    %v314 = vmul.f32 %v310, %v86
    %v315 = vadd.f32 %v303, %v311
    %v316 = vadd.f32 %v304, %v312
    %v317 = vadd.f32 %v305, %v313
    %v318 = vadd.f32 %v306, %v314
    %v319 = vld [vmem:[#allocation2 + $0x9] sm:$0xff]
    %v320 = vld [vmem:[#allocation2 + $0x11] sm:$0xff]
    %v321 = vld [vmem:[#allocation2 + $0x29] sm:$0xff]
    %v322 = vld [vmem:[#allocation2 + $0x31] sm:$0xff]
    %v323 = vlaneseq
    %v324 = vshrl.u32 %v323, 7
    %v325 = vsub.s32 0, %v324
    %v326 = vrot.slane %v47, %v325
    %v327 = vmul.f32 %v326, %v319
    %v328 = vmul.f32 %v326, %v320
    %v329 = vmul.f32 %v326, %v321
    %v330 = vmul.f32 %v326, %v322
    %v331 = vadd.f32 %v315, %v327
    %v332 = vadd.f32 %v316, %v328
    %v333 = vadd.f32 %v317, %v329
    %v334 = vadd.f32 %v318, %v330
    %v335 = vsel %vm40, %v331, 0.0
    %v336 = vrot.slane %v335, 4
    %v337 = vadd.f32 %v335, %v336
    %v338 = vrot.slane %v337, 2
    %v339 = vadd.f32 %v337, %v338
    %v340 = vrot.slane %v339, 1
    %v341 = vadd.f32 %v339, %v340
    %v342 = vsel %vm40, %v332, 0.0
    %v343 = vrot.slane %v342, 4
    %v344 = vadd.f32 %v342, %v343
    %v345 = vrot.slane %v344, 2
    %v346 = vadd.f32 %v344, %v345
    %v347 = vrot.slane %v346, 1
    %v348 = vadd.f32 %v346, %v347
    %v349 = vsel %vm40, %v333, 0.0
    %v350 = vrot.slane %v349, 4
    %v351 = vadd.f32 %v349, %v350
    %v352 = vrot.slane %v351, 2
    %v353 = vadd.f32 %v351, %v352
    %v354 = vrot.slane %v353, 1
    %v355 = vadd.f32 %v353, %v354
    %v356 = vsel %vm40, %v334, 0.0
    %v357 = vrot.slane %v356, 4
    %v358 = vadd.f32 %v356, %v357
    %v359 = vrot.slane %v358, 2
    %v360 = vadd.f32 %v358, %v359
    %v361 = vrot.slane %v360, 1
    %v362 = vadd.f32 %v360, %v361
    %v363 = vsub.f32 %v197, %v269
    %v364 = vsub.f32 %v204, %v276
    %v365 = vsub.f32 %v363, %v341
    %v366 = vsub.f32 %v364, %v348
    %v367 = vadd.f32 %v365, %v283
    %v368 = vadd.f32 %v366, %v290
    %v369 = vmul.f32 %v367, 0.015625
    %v370 = vmul.f32 %v368, 0.015625
    %v371 = vlaneseq
    %v372 = vshrl.u32 %v371, 7
    %v373 = vsub.s32 0, %v372
    %v374 = vrot.slane %v54, %v373
    %v375 = vadd.f32 %v369, %v374
    %v376 = vadd.f32 %v370, %v374
    %v379 = vrot.slane %v376, 7
    %vm380 = vcmask 1041409
    %v381 = vsel %vm380, %v379, %v375
    %vm383 = vcmask 58368
    %384 = vst.msk [vmem:[#allocation8] sm:$0x3] %vm383, %v381
    %v385 = vsub.f32 %v211, %v283
    %v386 = vsub.f32 %v218, %v290
    %v387 = vsub.f32 %v385, %v355
    %v388 = vsub.f32 %v386, %v362
    %v389 = vadd.f32 %v387, %v341
    %v390 = vadd.f32 %v388, %v348
    %v391 = vmul.f32 %v389, 0.015625
    %v392 = vmul.f32 %v390, 0.015625
    %v393 = vadd.f32 %v391, %v374
    %v394 = vadd.f32 %v392, %v374
    %v397 = vrot.slane %v394, 7
    %v398 = vsel %vm380, %v397, %v393
    %400 = vst.msk [vmem:[#allocation8 + $0x2] sm:$0x3] %vm383, %v398
    %s401 = scalar_lea.vmem [#allocation3], 256
    %v402 = vld [vmem:[%s401] sm:$0xff]
    %v403 = vld [vmem:[%s401 + $0x8] sm:$0xff]
    %v404 = vld [vmem:[%s401 + $0x10] sm:$0xff]
    %v405 = vld [vmem:[%s401 + $0x18] sm:$0xff]
    %v406 = vld [vmem:[%s401 + $0x20] sm:$0xff]
    %v407 = vld [vmem:[%s401 + $0x28] sm:$0xff]
    %v408 = vld [vmem:[%s401 + $0x30] sm:$0xff]
    %v409 = vld [vmem:[%s401 + $0x38] sm:$0xff]
    %v410 = vld [vmem:[%s401 + $0x40] sm:$0xff]
    %v411 = vld [vmem:[%s401 + $0x48] sm:$0xff]
    %v412 = vld [vmem:[%s401 + $0x50] sm:$0xff]
    %v413 = vld [vmem:[%s401 + $0x58] sm:$0xff]
    %v414 = vld [vmem:[%s401 + $0x60] sm:$0xff]
    %v415 = vld [vmem:[%s401 + $0x68] sm:$0xff]
    %v416 = vld [vmem:[%s401 + $0x70] sm:$0xff]
    %v417 = vld [vmem:[%s401 + $0x78] sm:$0xff]
    %v418 = vld [vmem:[%s401 + $0x80] sm:$0xff]
    %v419 = vld [vmem:[%s401 + $0x88] sm:$0xff]
    %v420 = vld [vmem:[%s401 + $0x90] sm:$0xff]
    %v421 = vld [vmem:[%s401 + $0x98] sm:$0xff]
    %v422 = vld [vmem:[%s401 + $0xa0] sm:$0xff]
    %v423 = vld [vmem:[%s401 + $0xa8] sm:$0xff]
    %v424 = vld [vmem:[%s401 + $0xb0] sm:$0xff]
    %v425 = vld [vmem:[%s401 + $0xb8] sm:$0xff]
    %v426 = vld [vmem:[%s401 + $0xc0] sm:$0xff]
    %v427 = vld [vmem:[%s401 + $0xc8] sm:$0xff]
    %v428 = vld [vmem:[%s401 + $0xd0] sm:$0xff]
    %v429 = vld [vmem:[%s401 + $0xd8] sm:$0xff]
    %v430 = vld [vmem:[%s401 + $0xe0] sm:$0xff]
    %v431 = vld [vmem:[%s401 + $0xe8] sm:$0xff]
    %v432 = vld [vmem:[%s401 + $0xf0] sm:$0xff]
    %v433 = vld [vmem:[%s401 + $0xf8] sm:$0xff]
    %v434 = vsel %vm40, %v402, 0.0
    %v435 = vsel %vm40, %v404, 0.0
    %v436 = vadd.f32 %v434, %v435
    %v437 = vsel %vm40, %v406, 0.0
    %v438 = vadd.f32 %v436, %v437
    %v439 = vsel %vm40, %v408, 0.0
    %v440 = vadd.f32 %v438, %v439
    %v441 = vsel %vm40, %v410, 0.0
    %v442 = vadd.f32 %v440, %v441
    %v443 = vsel %vm40, %v412, 0.0
    %v444 = vadd.f32 %v442, %v443
    %v445 = vsel %vm40, %v414, 0.0
    %v446 = vadd.f32 %v444, %v445
    %v447 = vsel %vm40, %v416, 0.0
    %v448 = vadd.f32 %v446, %v447
    %v449 = vsel %vm40, %v403, 0.0
    %v450 = vsel %vm40, %v405, 0.0
    %v451 = vadd.f32 %v449, %v450
    %v452 = vsel %vm40, %v407, 0.0
    %v453 = vadd.f32 %v451, %v452
    %v454 = vsel %vm40, %v409, 0.0
    %v455 = vadd.f32 %v453, %v454
    %v456 = vsel %vm40, %v411, 0.0
    %v457 = vadd.f32 %v455, %v456
    %v458 = vsel %vm40, %v413, 0.0
    %v459 = vadd.f32 %v457, %v458
    %v460 = vsel %vm40, %v415, 0.0
    %v461 = vadd.f32 %v459, %v460
    %v462 = vsel %vm40, %v417, 0.0
    %v463 = vadd.f32 %v461, %v462
    %v464 = vsel %vm40, %v418, 0.0
    %v465 = vsel %vm40, %v420, 0.0
    %v466 = vadd.f32 %v464, %v465
    %v467 = vsel %vm40, %v422, 0.0
    %v468 = vadd.f32 %v466, %v467
    %v469 = vsel %vm40, %v424, 0.0
    %v470 = vadd.f32 %v468, %v469
    %v471 = vsel %vm40, %v426, 0.0
    %v472 = vadd.f32 %v470, %v471
    %v473 = vsel %vm40, %v428, 0.0
    %v474 = vadd.f32 %v472, %v473
    %v475 = vsel %vm40, %v430, 0.0
    %v476 = vadd.f32 %v474, %v475
    %v477 = vsel %vm40, %v432, 0.0
    %v478 = vadd.f32 %v476, %v477
    %v479 = vsel %vm40, %v419, 0.0
    %v480 = vsel %vm40, %v421, 0.0
    %v481 = vadd.f32 %v479, %v480
    %v482 = vsel %vm40, %v423, 0.0
    %v483 = vadd.f32 %v481, %v482
    %v484 = vsel %vm40, %v425, 0.0
    %v485 = vadd.f32 %v483, %v484
    %v486 = vsel %vm40, %v427, 0.0
    %v487 = vadd.f32 %v485, %v486
    %v488 = vsel %vm40, %v429, 0.0
    %v489 = vadd.f32 %v487, %v488
    %v490 = vsel %vm40, %v431, 0.0
    %v491 = vadd.f32 %v489, %v490
    %v492 = vsel %vm40, %v433, 0.0
    %v493 = vadd.f32 %v491, %v492
    %494 = vst.msk [vmem:[#allocation2 + $0x8] sm:$0xff] %vm40, %v448
    %495 = vst.msk [vmem:[#allocation2 + $0x10] sm:$0xff] %vm40, %v463
    %496 = vst.msk [vmem:[#allocation2 + $0x28] sm:$0xff] %vm40, %v478
    %497 = vst.msk [vmem:[#allocation2 + $0x30] sm:$0xff] %vm40, %v493
    %v498 = vld [vmem:[#allocation2 + $0x7] sm:$0xff]
    %v499 = vld [vmem:[#allocation2 + $0xf] sm:$0xff]
    %v500 = vld [vmem:[#allocation2 + $0x27] sm:$0xff]
    %v501 = vld [vmem:[#allocation2 + $0x2f] sm:$0xff]
    %v502 = vmul.f32 %v158, %v498
    %v503 = vmul.f32 %v158, %v499
    %v504 = vmul.f32 %v158, %v500
    %v505 = vmul.f32 %v158, %v501
    %v506 = vmul.f32 %v166, %v448
    %v507 = vmul.f32 %v166, %v463
    %v508 = vmul.f32 %v166, %v478
    %v509 = vmul.f32 %v166, %v493
    %v510 = vadd.f32 %v502, %v506
    %v511 = vadd.f32 %v503, %v507
    %v512 = vadd.f32 %v504, %v508
    %v513 = vadd.f32 %v505, %v509
    %v514 = vld [vmem:[#allocation2 + $0x9] sm:$0xff]
    %v515 = vld [vmem:[#allocation2 + $0x11] sm:$0xff]
    %v516 = vld [vmem:[#allocation2 + $0x29] sm:$0xff]
    %v517 = vld [vmem:[#allocation2 + $0x31] sm:$0xff]
    %v518 = vmul.f32 %v182, %v514
    %v519 = vmul.f32 %v182, %v515
    %v520 = vmul.f32 %v182, %v516
    %v521 = vmul.f32 %v182, %v517
    %v522 = vadd.f32 %v510, %v518
    %v523 = vadd.f32 %v511, %v519
    %v524 = vadd.f32 %v512, %v520
    %v525 = vadd.f32 %v513, %v521
    %v526 = vsel %vm40, %v522, 0.0
    %v527 = vrot.slane %v526, 4
    %v528 = vadd.f32 %v526, %v527
    %v529 = vrot.slane %v528, 2
    %v530 = vadd.f32 %v528, %v529
    %v531 = vrot.slane %v530, 1
    %v532 = vadd.f32 %v530, %v531
    %v533 = vsel %vm40, %v523, 0.0
    %v534 = vrot.slane %v533, 4
    %v535 = vadd.f32 %v533, %v534
    %v536 = vrot.slane %v535, 2
    %v537 = vadd.f32 %v535, %v536
    %v538 = vrot.slane %v537, 1
    %v539 = vadd.f32 %v537, %v538
    %v540 = vsel %vm40, %v524, 0.0
    %v541 = vrot.slane %v540, 4
    %v542 = vadd.f32 %v540, %v541
    %v543 = vrot.slane %v542, 2
    %v544 = vadd.f32 %v542, %v543
    %v545 = vrot.slane %v544, 1
    %v546 = vadd.f32 %v544, %v545
    %v547 = vsel %vm40, %v525, 0.0
    %v548 = vrot.slane %v547, 4
    %v549 = vadd.f32 %v547, %v548
    %v550 = vrot.slane %v549, 2
    %v551 = vadd.f32 %v549, %v550
    %v552 = vrot.slane %v551, 1
    %v553 = vadd.f32 %v551, %v552
    %554 = vst.msk [vmem:[#allocation2 + $0x8] sm:$0xff] %vm40, %v402
    %555 = vst.msk [vmem:[#allocation2 + $0x10] sm:$0xff] %vm40, %v403
    %556 = vst.msk [vmem:[#allocation2 + $0x28] sm:$0xff] %vm40, %v418
    %557 = vst.msk [vmem:[#allocation2 + $0x30] sm:$0xff] %vm40, %v419
    %v558 = vld [vmem:[#allocation2 + $0x7] sm:$0xff]
    %v559 = vld [vmem:[#allocation2 + $0xf] sm:$0xff]
    %v560 = vld [vmem:[#allocation2 + $0x27] sm:$0xff]
    %v561 = vld [vmem:[#allocation2 + $0x2f] sm:$0xff]
    %v562 = vmul.f32 %v230, %v558
    %v563 = vmul.f32 %v230, %v559
    %v564 = vmul.f32 %v230, %v560
    %v565 = vmul.f32 %v230, %v561
    %v566 = vmul.f32 %v238, %v402
    %v567 = vmul.f32 %v238, %v403
    %v568 = vmul.f32 %v238, %v418
    %v569 = vmul.f32 %v238, %v419
    %v570 = vadd.f32 %v562, %v566
    %v571 = vadd.f32 %v563, %v567
    %v572 = vadd.f32 %v564, %v568
    %v573 = vadd.f32 %v565, %v569
    %v574 = vld [vmem:[#allocation2 + $0x9] sm:$0xff]
    %v575 = vld [vmem:[#allocation2 + $0x11] sm:$0xff]
    %v576 = vld [vmem:[#allocation2 + $0x29] sm:$0xff]
    %v577 = vld [vmem:[#allocation2 + $0x31] sm:$0xff]
    %v578 = vmul.f32 %v254, %v574
    %v579 = vmul.f32 %v254, %v575
    %v580 = vmul.f32 %v254, %v576
    %v581 = vmul.f32 %v254, %v577
    %v582 = vadd.f32 %v570, %v578
    %v583 = vadd.f32 %v571, %v579
    %v584 = vadd.f32 %v572, %v580
    %v585 = vadd.f32 %v573, %v581
    %v586 = vsel %vm40, %v582, 0.0
    %v587 = vrot.slane %v586, 4
    %v588 = vadd.f32 %v586, %v587
    %v589 = vrot.slane %v588, 2
    %v590 = vadd.f32 %v588, %v589
    %v591 = vrot.slane %v590, 1
    %v592 = vadd.f32 %v590, %v591
    %v593 = vsel %vm40, %v583, 0.0
    %v594 = vrot.slane %v593, 4
    %v595 = vadd.f32 %v593, %v594
    %v596 = vrot.slane %v595, 2
    %v597 = vadd.f32 %v595, %v596
    %v598 = vrot.slane %v597, 1
    %v599 = vadd.f32 %v597, %v598
    %v600 = vsel %vm40, %v584, 0.0
    %v601 = vrot.slane %v600, 4
    %v602 = vadd.f32 %v600, %v601
    %v603 = vrot.slane %v602, 2
    %v604 = vadd.f32 %v602, %v603
    %v605 = vrot.slane %v604, 1
    %v606 = vadd.f32 %v604, %v605
    %v607 = vsel %vm40, %v585, 0.0
    %v608 = vrot.slane %v607, 4
    %v609 = vadd.f32 %v607, %v608
    %v610 = vrot.slane %v609, 2
    %v611 = vadd.f32 %v609, %v610
    %v612 = vrot.slane %v611, 1
    %v613 = vadd.f32 %v611, %v612
    %614 = vst.msk [vmem:[#allocation2 + $0x8] sm:$0xff] %vm40, %v416
    %615 = vst.msk [vmem:[#allocation2 + $0x10] sm:$0xff] %vm40, %v417
    %616 = vst.msk [vmem:[#allocation2 + $0x28] sm:$0xff] %vm40, %v432
    %617 = vst.msk [vmem:[#allocation2 + $0x30] sm:$0xff] %vm40, %v433
    %v618 = vld [vmem:[#allocation2 + $0x7] sm:$0xff]
    %v619 = vld [vmem:[#allocation2 + $0xf] sm:$0xff]
    %v620 = vld [vmem:[#allocation2 + $0x27] sm:$0xff]
    %v621 = vld [vmem:[#allocation2 + $0x2f] sm:$0xff]
    %v622 = vmul.f32 %v302, %v618
    %v623 = vmul.f32 %v302, %v619
    %v624 = vmul.f32 %v302, %v620
    %v625 = vmul.f32 %v302, %v621
    %v626 = vmul.f32 %v310, %v416
    %v627 = vmul.f32 %v310, %v417
    %v628 = vmul.f32 %v310, %v432
    %v629 = vmul.f32 %v310, %v433
    %v630 = vadd.f32 %v622, %v626
    %v631 = vadd.f32 %v623, %v627
    %v632 = vadd.f32 %v624, %v628
    %v633 = vadd.f32 %v625, %v629
    %v634 = vld [vmem:[#allocation2 + $0x9] sm:$0xff]
    %v635 = vld [vmem:[#allocation2 + $0x11] sm:$0xff]
    %v636 = vld [vmem:[#allocation2 + $0x29] sm:$0xff]
    %v637 = vld [vmem:[#allocation2 + $0x31] sm:$0xff]
    %v638 = vmul.f32 %v326, %v634
    %v639 = vmul.f32 %v326, %v635
    %v640 = vmul.f32 %v326, %v636
    %v641 = vmul.f32 %v326, %v637
    %v642 = vadd.f32 %v630, %v638
    %v643 = vadd.f32 %v631, %v639
    %v644 = vadd.f32 %v632, %v640
    %v645 = vadd.f32 %v633, %v641
    %v646 = vsel %vm40, %v642, 0.0
    %v647 = vrot.slane %v646, 4
    %v648 = vadd.f32 %v646, %v647
    %v649 = vrot.slane %v648, 2
    %v650 = vadd.f32 %v648, %v649
    %v651 = vrot.slane %v650, 1
    %v652 = vadd.f32 %v650, %v651
    %v653 = vsel %vm40, %v643, 0.0
    %v654 = vrot.slane %v653, 4
    %v655 = vadd.f32 %v653, %v654
    %v656 = vrot.slane %v655, 2
    %v657 = vadd.f32 %v655, %v656
    %v658 = vrot.slane %v657, 1
    %v659 = vadd.f32 %v657, %v658
    %v660 = vsel %vm40, %v644, 0.0
    %v661 = vrot.slane %v660, 4
    %v662 = vadd.f32 %v660, %v661
    %v663 = vrot.slane %v662, 2
    %v664 = vadd.f32 %v662, %v663
    %v665 = vrot.slane %v664, 1
    %v666 = vadd.f32 %v664, %v665
    %v667 = vsel %vm40, %v645, 0.0
    %v668 = vrot.slane %v667, 4
    %v669 = vadd.f32 %v667, %v668
    %v670 = vrot.slane %v669, 2
    %v671 = vadd.f32 %v669, %v670
    %v672 = vrot.slane %v671, 1
    %v673 = vadd.f32 %v671, %v672
    %v674 = vsub.f32 %v532, %v592
    %v675 = vsub.f32 %v539, %v599
    %v676 = vsub.f32 %v674, %v652
    %v677 = vsub.f32 %v675, %v659
    %v678 = vadd.f32 %v676, %v606
    %v679 = vadd.f32 %v677, %v613
    %v680 = vmul.f32 %v678, 0.015625
    %v681 = vmul.f32 %v679, 0.015625
    %v682 = vadd.f32 %v680, %v374
    %v683 = vadd.f32 %v681, %v374
    %v686 = vrot.slane %v683, 7
    %v687 = vsel %vm380, %v686, %v682
    %s689 = scalar_lea.vmem [#allocation8], 4
    %690 = vst.msk [vmem:[%s689] sm:$0x3] %vm383, %v687
    %v691 = vsub.f32 %v546, %v606
    %v692 = vsub.f32 %v553, %v613
    %v693 = vsub.f32 %v691, %v666
    %v694 = vsub.f32 %v692, %v673
    %v695 = vadd.f32 %v693, %v652
    %v696 = vadd.f32 %v694, %v659
    %v697 = vmul.f32 %v695, 0.015625
    %v698 = vmul.f32 %v696, 0.015625
    %v699 = vadd.f32 %v697, %v374
    %v700 = vadd.f32 %v698, %v374
    %v703 = vrot.slane %v700, 7
    %v704 = vsel %vm380, %v703, %v699
    %706 = vst.msk [vmem:[%s689 + $0x2] sm:$0x3] %vm383, %v704
    // Predicated region
    $region18: #{tpu_custom_call.1} parent=1 // pred_check
      _
    $region19: #{tpu_custom_call.1} parent=1 // pred_check_branch
      %708 = sbr.rel (0) target = $region21
    $region20: #{tpu_custom_call.1} parent=1 // pred_region
      %s710 = ssub.s32 128, 128
      %711 = vsyncadd [#allocation5], %s710
      %s712 = sshll.u32 [#allocation8], 4
      %s713 = int_to_ptr.vmem [resolvable:$true] %s712
      %718 = dma.vmem_to_hbm [thread:$0]  %s713, 128, %s2, [#allocation5], 64, 64, 4
    $region21: #{tpu_custom_call.1} parent=1 // pred_fallthru
      _
    // Predicated region
    $region22: #{tpu_custom_call.1} parent=1 // pred_check
      _
    $region23: #{tpu_custom_call.1} parent=1 // pred_check_branch
      %720 = sbr.rel (0) target = $region25
    $region24: #{tpu_custom_call.1} parent=1 // pred_region
      %721 = dma.done [#allocation5], 128
    $region25: #{tpu_custom_call.1} parent=1 // pred_fallthru
      _
    %722 = vsyncpa [#allocation4], 1
    %723 = vsyncpa [#allocation7], 1
    %724 = vsyncpa [#allocation5], 1

</llo_original>
